<compile_context>
chip_gen: v6e
topology: v6e:2x2x1
jax: 0.10.0
libtpu: 0.0.40
codegen_flags: <defaults>
</compile_context>

<pallas_src>
import math

import numpy as np
import jax
import jax.numpy as jnp
from jax import lax
from jax.experimental import pallas as pl
from jax.experimental.pallas import tpu as pltpu

V = 768     # num_embeddings
D = 32      # embedding_dim
B = 2       # batch
L = 5       # query tokens per batch element          (orig x1: (5,))
K = D       # key/value index rows per batch element  (orig x2 last dim == 32 == D)
M = 10      # number of -inf mask rows appended       (orig m2 second dim == 10)
T = L + M   # 15 output rows per batch element
TP = 16     # T padded to a sublane (8) multiple; the extra row is never stored

SCALE = 0.3 / math.sqrt(D)   # folded: 1/sqrt(D) from `w`, 0.3 from `0.3 * v4`


def attn_kernel(qidx_ref, kidx_ref, vidx_ref, tbl_ref, out_ref):
    """Single-invocation kernel (no grid): both batch elements in one step."""
    tbl = tbl_ref[...]                       # (V, 3*D) packed [query|key|value]

    def gather(idx_ref, n, col_off):
        # Vectorized embedding lookup as a one-hot matmul on the MXU:
        #   out[i, :] = table[idx[i], col_off : col_off + D]
        # ids sit on the sublane axis ((n, 1)); a lane-iota compare builds the
        # (n, V) one-hot fully vectorized.  Out-of-range ids give an all-zero
        # row (no silent OOB read).  The extra packed output lanes (96 < 128)
        # are free on the MXU, so dot against the full RHS and slice after.
        idx = idx_ref[...]                                       # (n, 1) int32
        cols = lax.broadcasted_iota(jnp.int32, (n, V), 1)        # (n, V)
        onehot = (cols == idx).astype(jnp.float32)               # (n, V)
        g = jnp.dot(onehot, tbl, preferred_element_type=jnp.float32)  # (n, 3D)
        return g[:, col_off:col_off + D]                         # (n, D)

    q_all = gather(qidx_ref, B * TP, 0)      # query_embedding(x1)  (+pad rows)
    k_all = gather(kidx_ref, B * K, D)       # key_embedding.weight[x2]
    v_all = gather(vidx_ref, B * K, 2 * D)   # value_embedding(x3)

    rows = lax.broadcasted_iota(jnp.int32, (TP, D), 0)
    nan_rows = rows >= L     # rows L..: softmax over all -inf rows -> NaN

    outs = []
    for b in range(B):       # B == 2, static unroll
        q_b = q_all[b * TP:(b + 1) * TP, :]      # (TP, D) aligned static slice
        k_b = k_all[b * K:(b + 1) * K, :]        # (D, D)
        v_b = v_all[b * K:(b + 1) * K, :]        # (D, D)

        # logits = 0.3 * (w1 @ w2) / sqrt(D) with both scales folded.
        logits = jnp.dot(q_b, k_b, preferred_element_type=jnp.float32) * SCALE
        mx = jnp.max(logits, axis=-1, keepdims=True)
        ex = jnp.exp(logits - mx)
        p = ex / jnp.sum(ex, axis=-1, keepdims=True)             # exact softmax
        o = jnp.dot(p, v_b, preferred_element_type=jnp.float32)  # (TP, D)

        # Mask rows become NaN, exactly like torch.softmax(all -inf) @ v7.
        o = jnp.where(nan_rows, jnp.float32(jnp.nan), o)
        outs.append(o[:T, :])                    # drop the single padding row

    out_ref[...] = jnp.stack(outs, axis=0)       # one full (B, T, D) store


def model_forward(x1, x2, x3, qw, kw, vw):
    # Pad the (B, L) query ids to (B, TP) so every per-batch slice in the
    # kernel starts on a sublane (8-row) boundary; pad ids just gather row 0
    # and are masked/dropped before the store.
    q_pad = jnp.zeros((B, TP), jnp.int32).at[:, :L].set(x1.astype(jnp.int32))
    q_idx = q_pad.reshape(B * TP, 1)
    k_idx = x2.astype(jnp.int32).reshape(B * K, 1)
    v_idx = x3.astype(jnp.int32).reshape(B * K, 1)

    # One packed (V, 3*D) table -> a single table DMA and 3x less lane padding.
    tbl = jnp.concatenate([qw, kw, vw], axis=1).astype(jnp.float32)

    n_gather_rows = B * TP + 2 * B * K
    cost = pl.CostEstimate(
        flops=2 * n_gather_rows * V * 3 * D        # one-hot gather matmuls
              + B * 4 * TP * D * K,                # q@k and p@v per batch
        transcendentals=B * TP * K,                # softmax exps
        bytes_accessed=4 * (tbl.size + n_gather_rows + B * T * D),
    )

    return pl.pallas_call(
        attn_kernel,
        out_shape=jax.ShapeDtypeStruct((B, T, D), jnp.float32),
        in_specs=[pl.BlockSpec(memory_space=pltpu.MemorySpace.VMEM)] * 4,
        out_specs=pl.BlockSpec(memory_space=pltpu.MemorySpace.VMEM),
        cost_estimate=cost,
    )(q_idx, k_idx, v_idx, tbl)


def reference(x1, x2, x3, qw, kw, vw):
    w1 = qw[x1]                                         # (B, L, D)
    w2 = kw[x2]                                         # (B, D, D)
    w = jnp.einsum("bld,bde->ble", w1, w2, precision="highest") / math.sqrt(D)
    m2 = jnp.full((B, M, D), -jnp.inf, dtype=jnp.float32)
    v4 = jnp.concatenate([w, m2], axis=1)
    logits = 0.3 * v4
    ex = jnp.exp(logits - jnp.max(logits, axis=-1, keepdims=True))
    v5 = ex / jnp.sum(ex, axis=-1, keepdims=True)
    v7 = vw[x3]                                         # (B, D, D)
    return jnp.einsum("btd,bde->bte", v5, v7, precision="highest")


if __name__ == "__main__":
    key = jax.random.PRNGKey(0)
    k1, k2, k3, kq, kk, kv = jax.random.split(key, 6)

    x1 = jax.random.randint(k1, (B, L), 0, V, dtype=jnp.int32)
    x2 = jax.random.randint(k2, (B, K), 0, V, dtype=jnp.int32)
    x3 = jax.random.randint(k3, (B, K), 0, V, dtype=jnp.int32)

    # Deterministic embedding tables (nn.Embedding default init ~ N(0, 1))
    qw = jax.random.normal(kq, (V, D), dtype=jnp.float32)
    kw = jax.random.normal(kk, (V, D), dtype=jnp.float32)
    vw = jax.random.normal(kv, (V, D), dtype=jnp.float32)

    out = jax.block_until_ready(model_forward(x1, x2, x3, qw, kw, vw))
    ref = reference(x1, x2, x3, qw, kw, vw)

    # Bottom M rows are NaN in both (softmax over all -inf); compare real rows.
    # The approx reciprocal is gone, so the remaining tolerance only covers
    # MXU f32 matmul rounding differences vs. the highest-precision XLA ref.
    np.testing.assert_allclose(np.asarray(out[:, :L, :]),
                               np.asarray(ref[:, :L, :]),
                               rtol=1e-3, atol=1e-3)
    assert bool(jnp.all(jnp.isnan(out[:, L:, :])))

    print("KERNEL_OK")
</pallas_src>

<mosaic_0001>
module attributes {stable_mosaic.version = 11 : i64} {
  func.func @attn_kernel(%arg0: memref<32x1xi32, #tpu.memory_space<vmem>>, %arg1: memref<64x1xi32, #tpu.memory_space<vmem>>, %arg2: memref<64x1xi32, #tpu.memory_space<vmem>>, %arg3: memref<768x96xf32, #tpu.memory_space<vmem>>, %arg4: memref<2x15x32xf32, #tpu.memory_space<vmem>>) attributes {dimension_semantics = [], scalar_prefetch = 0 : i64, scratch_operands = 0 : i64, tpu.core_type = #tpu.core_type<tc>} {
    %c0 = arith.constant 0 : index
    %c0_0 = arith.constant 0 : index
    %0 = vector.load %arg3[%c0, %c0_0] : memref<768x96xf32, #tpu.memory_space<vmem>>, vector<768x96xf32>
    %c0_1 = arith.constant 0 : index
    %c0_2 = arith.constant 0 : index
    %1 = vector.load %arg0[%c0_1, %c0_2] : memref<32x1xi32, #tpu.memory_space<vmem>>, vector<32x1xi32>
    %2 = tpu.iota {dimensions = array<i32: 1>} : vector<32x768xi32>
    %3 = vector.broadcast %1 : vector<32x1xi32> to vector<32x768xi32>
    %4 = arith.cmpi eq, %2, %3 : vector<32x768xi32>
    %5 = arith.extui %4 : vector<32x768xi1> to vector<32x768xi32>
    %6 = arith.sitofp %5 : vector<32x768xi32> to vector<32x768xf32>
    %cst = arith.constant dense<0.000000e+00> : vector<32x96xf32>
    %7 = tpu.matmul %6, %0, %cst {dimension_numbers = #tpu.dot_dimension_numbers<[1], [0], [0], [1], [0, 0, 1, 1], [], []>} : vector<32x768xf32>, vector<768x96xf32>, vector<32x96xf32> -> vector<32x96xf32>
    %8 = vector.extract_strided_slice %7 {offsets = [0, 0], sizes = [32, 32], strides = [1, 1]} : vector<32x96xf32> to vector<32x32xf32>
    %c0_3 = arith.constant 0 : index
    %c0_4 = arith.constant 0 : index
    %9 = vector.load %arg1[%c0_3, %c0_4] : memref<64x1xi32, #tpu.memory_space<vmem>>, vector<64x1xi32>
    %10 = tpu.iota {dimensions = array<i32: 1>} : vector<64x768xi32>
    %11 = vector.broadcast %9 : vector<64x1xi32> to vector<64x768xi32>
    %12 = arith.cmpi eq, %10, %11 : vector<64x768xi32>
    %13 = arith.extui %12 : vector<64x768xi1> to vector<64x768xi32>
    %14 = arith.sitofp %13 : vector<64x768xi32> to vector<64x768xf32>
    %cst_5 = arith.constant dense<0.000000e+00> : vector<64x96xf32>
    %15 = tpu.matmul %14, %0, %cst_5 {dimension_numbers = #tpu.dot_dimension_numbers<[1], [0], [0], [1], [0, 0, 1, 1], [], []>} : vector<64x768xf32>, vector<768x96xf32>, vector<64x96xf32> -> vector<64x96xf32>
    %16 = vector.extract_strided_slice %15 {offsets = [0, 32], sizes = [64, 32], strides = [1, 1]} : vector<64x96xf32> to vector<64x32xf32>
    %c0_6 = arith.constant 0 : index
    %c0_7 = arith.constant 0 : index
    %17 = vector.load %arg2[%c0_6, %c0_7] : memref<64x1xi32, #tpu.memory_space<vmem>>, vector<64x1xi32>
    %18 = tpu.iota {dimensions = array<i32: 1>} : vector<64x768xi32>
    %19 = vector.broadcast %17 : vector<64x1xi32> to vector<64x768xi32>
    %20 = arith.cmpi eq, %18, %19 : vector<64x768xi32>
    %21 = arith.extui %20 : vector<64x768xi1> to vector<64x768xi32>
    %22 = arith.sitofp %21 : vector<64x768xi32> to vector<64x768xf32>
    %cst_8 = arith.constant dense<0.000000e+00> : vector<64x96xf32>
    %23 = tpu.matmul %22, %0, %cst_8 {dimension_numbers = #tpu.dot_dimension_numbers<[1], [0], [0], [1], [0, 0, 1, 1], [], []>} : vector<64x768xf32>, vector<768x96xf32>, vector<64x96xf32> -> vector<64x96xf32>
    %24 = vector.extract_strided_slice %23 {offsets = [0, 64], sizes = [64, 32], strides = [1, 1]} : vector<64x96xf32> to vector<64x32xf32>
    %25 = tpu.iota {dimensions = array<i32: 0>} : vector<16x32xi32>
    %c5_i32 = arith.constant 5 : i32
    %26 = vector.broadcast %c5_i32 : i32 to vector<16x32xi32>
    %27 = arith.cmpi sge, %25, %26 : vector<16x32xi32>
    %28 = vector.extract_strided_slice %8 {offsets = [0, 0], sizes = [16, 32], strides = [1, 1]} : vector<32x32xf32> to vector<16x32xf32>
    %29 = vector.extract_strided_slice %16 {offsets = [0, 0], sizes = [32, 32], strides = [1, 1]} : vector<64x32xf32> to vector<32x32xf32>
    %30 = vector.extract_strided_slice %24 {offsets = [0, 0], sizes = [32, 32], strides = [1, 1]} : vector<64x32xf32> to vector<32x32xf32>
    %cst_9 = arith.constant dense<0.000000e+00> : vector<16x32xf32>
    %31 = tpu.matmul %28, %29, %cst_9 {dimension_numbers = #tpu.dot_dimension_numbers<[1], [0], [0], [1], [0, 0, 1, 1], [], []>} : vector<16x32xf32>, vector<32x32xf32>, vector<16x32xf32> -> vector<16x32xf32>
    %cst_10 = arith.constant 0.0530330092 : f32
    %32 = vector.broadcast %cst_10 : f32 to vector<16x32xf32>
    %33 = arith.mulf %31, %32 : vector<16x32xf32>
    %cst_11 = arith.constant dense<0xFF800000> : vector<16xf32>
    %34 = vector.multi_reduction <maximumf>, %33, %cst_11 [1] : vector<16x32xf32> to vector<16xf32>
    %35 = vector.shape_cast %34 : vector<16xf32> to vector<16x1xf32>
    %36 = vector.broadcast %35 : vector<16x1xf32> to vector<16x32xf32>
    %37 = arith.subf %33, %36 : vector<16x32xf32>
    %38 = math.exp %37 : vector<16x32xf32>
    %cst_12 = arith.constant dense<0.000000e+00> : vector<16xf32>
    %39 = vector.multi_reduction <add>, %38, %cst_12 [1] : vector<16x32xf32> to vector<16xf32>
    %40 = vector.shape_cast %39 : vector<16xf32> to vector<16x1xf32>
    %41 = vector.broadcast %40 : vector<16x1xf32> to vector<16x32xf32>
    %42 = arith.divf %38, %41 : vector<16x32xf32>
    %cst_13 = arith.constant dense<0.000000e+00> : vector<16x32xf32>
    %43 = tpu.matmul %42, %30, %cst_13 {dimension_numbers = #tpu.dot_dimension_numbers<[1], [0], [0], [1], [0, 0, 1, 1], [], []>} : vector<16x32xf32>, vector<32x32xf32>, vector<16x32xf32> -> vector<16x32xf32>
    %cst_14 = arith.constant 0x7FC00000 : f32
    %44 = vector.broadcast %cst_14 : f32 to vector<16x32xf32>
    %45 = arith.select %27, %44, %43 : vector<16x32xi1>, vector<16x32xf32>
    %46 = vector.extract_strided_slice %45 {offsets = [0, 0], sizes = [15, 32], strides = [1, 1]} : vector<16x32xf32> to vector<15x32xf32>
    %47 = vector.extract_strided_slice %8 {offsets = [16, 0], sizes = [16, 32], strides = [1, 1]} : vector<32x32xf32> to vector<16x32xf32>
    %48 = vector.extract_strided_slice %16 {offsets = [32, 0], sizes = [32, 32], strides = [1, 1]} : vector<64x32xf32> to vector<32x32xf32>
    %49 = vector.extract_strided_slice %24 {offsets = [32, 0], sizes = [32, 32], strides = [1, 1]} : vector<64x32xf32> to vector<32x32xf32>
    %cst_15 = arith.constant dense<0.000000e+00> : vector<16x32xf32>
    %50 = tpu.matmul %47, %48, %cst_15 {dimension_numbers = #tpu.dot_dimension_numbers<[1], [0], [0], [1], [0, 0, 1, 1], [], []>} : vector<16x32xf32>, vector<32x32xf32>, vector<16x32xf32> -> vector<16x32xf32>
    %cst_16 = arith.constant 0.0530330092 : f32
    %51 = vector.broadcast %cst_16 : f32 to vector<16x32xf32>
    %52 = arith.mulf %50, %51 : vector<16x32xf32>
    %cst_17 = arith.constant dense<0xFF800000> : vector<16xf32>
    %53 = vector.multi_reduction <maximumf>, %52, %cst_17 [1] : vector<16x32xf32> to vector<16xf32>
    %54 = vector.shape_cast %53 : vector<16xf32> to vector<16x1xf32>
    %55 = vector.broadcast %54 : vector<16x1xf32> to vector<16x32xf32>
    %56 = arith.subf %52, %55 : vector<16x32xf32>
    %57 = math.exp %56 : vector<16x32xf32>
    %cst_18 = arith.constant dense<0.000000e+00> : vector<16xf32>
    %58 = vector.multi_reduction <add>, %57, %cst_18 [1] : vector<16x32xf32> to vector<16xf32>
    %59 = vector.shape_cast %58 : vector<16xf32> to vector<16x1xf32>
    %60 = vector.broadcast %59 : vector<16x1xf32> to vector<16x32xf32>
    %61 = arith.divf %57, %60 : vector<16x32xf32>
    %cst_19 = arith.constant dense<0.000000e+00> : vector<16x32xf32>
    %62 = tpu.matmul %61, %49, %cst_19 {dimension_numbers = #tpu.dot_dimension_numbers<[1], [0], [0], [1], [0, 0, 1, 1], [], []>} : vector<16x32xf32>, vector<32x32xf32>, vector<16x32xf32> -> vector<16x32xf32>
    %cst_20 = arith.constant 0x7FC00000 : f32
    %63 = vector.broadcast %cst_20 : f32 to vector<16x32xf32>
    %64 = arith.select %27, %63, %62 : vector<16x32xi1>, vector<16x32xf32>
    %65 = vector.extract_strided_slice %64 {offsets = [0, 0], sizes = [15, 32], strides = [1, 1]} : vector<16x32xf32> to vector<15x32xf32>
    %66 = vector.shape_cast %46 : vector<15x32xf32> to vector<1x15x32xf32>
    %67 = vector.shape_cast %65 : vector<15x32xf32> to vector<1x15x32xf32>
    %68 = tpu.concatenate %66, %67 in 0 : vector<1x15x32xf32>, vector<1x15x32xf32> -> vector<2x15x32xf32>
    %c0_21 = arith.constant 0 : index
    %c0_22 = arith.constant 0 : index
    %c0_23 = arith.constant 0 : index
    %69 = vector.load %arg4[%c0_21, %c0_22, %c0_23] : memref<2x15x32xf32, #tpu.memory_space<vmem>>, vector<2x15x32xf32>
    tpu.vector_store %arg4[%c0_21, %c0_22, %c0_23], %68 {strides = array<i32>} : memref<2x15x32xf32, #tpu.memory_space<vmem>>, vector<2x15x32xf32>,
    return
  }
}

</mosaic_0001>

<llo_original>
// kernel: tpu_custom_call.1
$region0: #{tpu_custom_call.1}
  #allocation0 [shape = 'u32[]', space=smem, size = 0x4, offset = 0x4, fixed_abs, tag = 'smem constant byte address 0x4 - core index']
  #allocation1 [shape = 'u32[144,128]{1,0:T(1,128)}', space=vmem, size = 0x12000, scoped, tag = 'internal scratch']
  %s0 = inlined_call_operand.vmem [shape: s32[32,1], index: 0, kind: input, shape index: {}]
  %s1 = inlined_call_operand.vmem [shape: s32[64,1], index: 1, kind: input, shape index: {}]
  %s2 = inlined_call_operand.vmem [shape: s32[64,1], index: 2, kind: input, shape index: {}]
  %s3 = inlined_call_operand.vmem [shape: f32[768,96], index: 3, kind: input, shape index: {}]
  %s4 = inlined_call_operand.vmem [shape: f32[2,15,32], index: 4, kind: output, shape index: {}]
  %s5 = sld [smem:[#allocation0]]
  $region26: #{tpu_custom_call.1} parent=0
    _
  %s7 = ssub.s32 1, %s5
  %s8 = scalar_select 0, %s7, %s5
  // Predicated region
  $region2: #{tpu_custom_call.1} parent=0 // pred_check
    _
  $region3: #{tpu_custom_call.1} parent=0 // pred_check_branch
    %10 = sbr.rel (0) target = $region5
  $region4: #{tpu_custom_call.1} parent=0 // pred_region
    _
  $region5: #{tpu_custom_call.1} parent=0 // pred_fallthru
    _
  // Predicated region
  $region6: #{tpu_custom_call.1} parent=0 // pred_check
    _
  $region7: #{tpu_custom_call.1} parent=0 // pred_check_branch
    %12 = sbr.rel (0) target = $region9
  $region8: #{tpu_custom_call.1} parent=0 // pred_region
    _
  $region9: #{tpu_custom_call.1} parent=0 // pred_fallthru
    _
  // Predicated region
  $region10: #{tpu_custom_call.1} parent=0 // pred_check
    _
  $region11: #{tpu_custom_call.1} parent=0 // pred_check_branch
    %14 = sbr.rel (0) target = $region13
  $region12: #{tpu_custom_call.1} parent=0 // pred_region
    _
  $region13: #{tpu_custom_call.1} parent=0 // pred_fallthru
    _
  // Predicated region
  $region14: #{tpu_custom_call.1} parent=0 // pred_check
    _
  $region15: #{tpu_custom_call.1} parent=0 // pred_check_branch
    %16 = sbr.rel (0) target = $region17
  $region16: #{tpu_custom_call.1} parent=0 // pred_region
    _
  $region17: #{tpu_custom_call.1} parent=0 // pred_fallthru
    _
  %v17 = vld [vmem:[%s3] sm:$0xff]
  %v18 = vld [vmem:[%s3 + $0x8] sm:$0xff]
  %v19 = vld [vmem:[%s3 + $0x10] sm:$0xff]
  %v20 = vld [vmem:[%s3 + $0x18] sm:$0xff]
  %v21 = vld [vmem:[%s3 + $0x20] sm:$0xff]
  %v22 = vld [vmem:[%s3 + $0x28] sm:$0xff]
  %v23 = vld [vmem:[%s3 + $0x30] sm:$0xff]
  %v24 = vld [vmem:[%s3 + $0x38] sm:$0xff]
  %v25 = vld [vmem:[%s3 + $0x40] sm:$0xff]
  %v26 = vld [vmem:[%s3 + $0x48] sm:$0xff]
  %v27 = vld [vmem:[%s3 + $0x50] sm:$0xff]
  %v28 = vld [vmem:[%s3 + $0x58] sm:$0xff]
  %v29 = vld [vmem:[%s3 + $0x60] sm:$0xff]
  %v30 = vld [vmem:[%s3 + $0x68] sm:$0xff]
  %v31 = vld [vmem:[%s3 + $0x70] sm:$0xff]
  %v32 = vld [vmem:[%s3 + $0x78] sm:$0xff]
  %v33 = vld [vmem:[%s3 + $0x80] sm:$0xff]
  %v34 = vld [vmem:[%s3 + $0x88] sm:$0xff]
  %v35 = vld [vmem:[%s3 + $0x90] sm:$0xff]
  %v36 = vld [vmem:[%s3 + $0x98] sm:$0xff]
  %v37 = vld [vmem:[%s3 + $0xa0] sm:$0xff]
  %v38 = vld [vmem:[%s3 + $0xa8] sm:$0xff]
  %v39 = vld [vmem:[%s3 + $0xb0] sm:$0xff]
  %v40 = vld [vmem:[%s3 + $0xb8] sm:$0xff]
  %v41 = vld [vmem:[%s3 + $0xc0] sm:$0xff]
  %v42 = vld [vmem:[%s3 + $0xc8] sm:$0xff]
  %v43 = vld [vmem:[%s3 + $0xd0] sm:$0xff]
  %v44 = vld [vmem:[%s3 + $0xd8] sm:$0xff]
  %v45 = vld [vmem:[%s3 + $0xe0] sm:$0xff]
  %v46 = vld [vmem:[%s3 + $0xe8] sm:$0xff]
  %v47 = vld [vmem:[%s3 + $0xf0] sm:$0xff]
  %v48 = vld [vmem:[%s3 + $0xf8] sm:$0xff]
  %v49 = vld [vmem:[%s3 + $0x100] sm:$0xff]
  %v50 = vld [vmem:[%s3 + $0x108] sm:$0xff]
  %v51 = vld [vmem:[%s3 + $0x110] sm:$0xff]
  %v52 = vld [vmem:[%s3 + $0x118] sm:$0xff]
  %v53 = vld [vmem:[%s3 + $0x120] sm:$0xff]
  %v54 = vld [vmem:[%s3 + $0x128] sm:$0xff]
  %v55 = vld [vmem:[%s3 + $0x130] sm:$0xff]
  %v56 = vld [vmem:[%s3 + $0x138] sm:$0xff]
  %v57 = vld [vmem:[%s3 + $0x140] sm:$0xff]
  %v58 = vld [vmem:[%s3 + $0x148] sm:$0xff]
  %v59 = vld [vmem:[%s3 + $0x150] sm:$0xff]
  %v60 = vld [vmem:[%s3 + $0x158] sm:$0xff]
  %v61 = vld [vmem:[%s3 + $0x160] sm:$0xff]
  %v62 = vld [vmem:[%s3 + $0x168] sm:$0xff]
  %v63 = vld [vmem:[%s3 + $0x170] sm:$0xff]
  %v64 = vld [vmem:[%s3 + $0x178] sm:$0xff]
  %v65 = vld [vmem:[%s3 + $0x180] sm:$0xff]
  %v66 = vld [vmem:[%s3 + $0x188] sm:$0xff]
  %v67 = vld [vmem:[%s3 + $0x190] sm:$0xff]
  %v68 = vld [vmem:[%s3 + $0x198] sm:$0xff]
  %v69 = vld [vmem:[%s3 + $0x1a0] sm:$0xff]
  %v70 = vld [vmem:[%s3 + $0x1a8] sm:$0xff]
  %v71 = vld [vmem:[%s3 + $0x1b0] sm:$0xff]
  %v72 = vld [vmem:[%s3 + $0x1b8] sm:$0xff]
  %v73 = vld [vmem:[%s3 + $0x1c0] sm:$0xff]
  %v74 = vld [vmem:[%s3 + $0x1c8] sm:$0xff]
  %v75 = vld [vmem:[%s3 + $0x1d0] sm:$0xff]
  %v76 = vld [vmem:[%s3 + $0x1d8] sm:$0xff]
  %v77 = vld [vmem:[%s3 + $0x1e0] sm:$0xff]
  %v78 = vld [vmem:[%s3 + $0x1e8] sm:$0xff]
  %v79 = vld [vmem:[%s3 + $0x1f0] sm:$0xff]
  %v80 = vld [vmem:[%s3 + $0x1f8] sm:$0xff]
  %v81 = vld [vmem:[%s3 + $0x200] sm:$0xff]
  %v82 = vld [vmem:[%s3 + $0x208] sm:$0xff]
  %v83 = vld [vmem:[%s3 + $0x210] sm:$0xff]
  %v84 = vld [vmem:[%s3 + $0x218] sm:$0xff]
  %v85 = vld [vmem:[%s3 + $0x220] sm:$0xff]
  %v86 = vld [vmem:[%s3 + $0x228] sm:$0xff]
  %v87 = vld [vmem:[%s3 + $0x230] sm:$0xff]
  %v88 = vld [vmem:[%s3 + $0x238] sm:$0xff]
  %v89 = vld [vmem:[%s3 + $0x240] sm:$0xff]
  %v90 = vld [vmem:[%s3 + $0x248] sm:$0xff]
  %v91 = vld [vmem:[%s3 + $0x250] sm:$0xff]
  %v92 = vld [vmem:[%s3 + $0x258] sm:$0xff]
  %v93 = vld [vmem:[%s3 + $0x260] sm:$0xff]
  %v94 = vld [vmem:[%s3 + $0x268] sm:$0xff]
  %v95 = vld [vmem:[%s3 + $0x270] sm:$0xff]
  %v96 = vld [vmem:[%s3 + $0x278] sm:$0xff]
  %v97 = vld [vmem:[%s3 + $0x280] sm:$0xff]
  %v98 = vld [vmem:[%s3 + $0x288] sm:$0xff]
  %v99 = vld [vmem:[%s3 + $0x290] sm:$0xff]
  %v100 = vld [vmem:[%s3 + $0x298] sm:$0xff]
  %v101 = vld [vmem:[%s3 + $0x2a0] sm:$0xff]
  %v102 = vld [vmem:[%s3 + $0x2a8] sm:$0xff]
  %v103 = vld [vmem:[%s3 + $0x2b0] sm:$0xff]
  %v104 = vld [vmem:[%s3 + $0x2b8] sm:$0xff]
  %v105 = vld [vmem:[%s3 + $0x2c0] sm:$0xff]
  %v106 = vld [vmem:[%s3 + $0x2c8] sm:$0xff]
  %v107 = vld [vmem:[%s3 + $0x2d0] sm:$0xff]
  %v108 = vld [vmem:[%s3 + $0x2d8] sm:$0xff]
  %v109 = vld [vmem:[%s3 + $0x2e0] sm:$0xff]
  %v110 = vld [vmem:[%s3 + $0x2e8] sm:$0xff]
  %v111 = vld [vmem:[%s3 + $0x2f0] sm:$0xff]
  %v112 = vld [vmem:[%s3 + $0x2f8] sm:$0xff]
  %v113 = vld [vmem:[%s0] sm:$0xff]
  %v114 = vld [vmem:[%s0 + $0x8] sm:$0xff]
  %v115 = vld [vmem:[%s0 + $0x10] sm:$0xff]
  %v116 = vld [vmem:[%s0 + $0x18] sm:$0xff]
  %v117 = vlaneseq
  %v118 = vand.u32 %v117, 127
  %v119 = vadd.s32 %v118, 128
  %v120 = vadd.s32 %v118, 256
  %v121 = vadd.s32 %v118, 384
  %v122 = vadd.s32 %v118, 512
  %v123 = vadd.s32 %v118, 640
  %124 = vset.pattern.permute.xlu0 0
  %125 = vperm.xlu0 %124, %v113
  %v126 = vpop.permute.xlu0 %125
  %127 = vset.pattern.permute.xlu0 0
  %128 = vperm.xlu0 %127, %v114
  %v129 = vpop.permute.xlu0 %128
  %130 = vset.pattern.permute.xlu0 0
  %131 = vperm.xlu0 %130, %v115
  %v132 = vpop.permute.xlu0 %131
  %133 = vset.pattern.permute.xlu0 0
  %134 = vperm.xlu0 %133, %v116
  %v135 = vpop.permute.xlu0 %134
  %vm136 = vcmp.eq.s32.totalorder %v118, %v126
  %vm137 = vcmp.eq.s32.totalorder %v119, %v126
  %vm138 = vcmp.eq.s32.totalorder %v120, %v126
  %vm139 = vcmp.eq.s32.totalorder %v121, %v126
  %vm140 = vcmp.eq.s32.totalorder %v122, %v126
  %vm141 = vcmp.eq.s32.totalorder %v123, %v126
  %vm142 = vcmp.eq.s32.totalorder %v118, %v129
  %vm143 = vcmp.eq.s32.totalorder %v119, %v129
  %vm144 = vcmp.eq.s32.totalorder %v120, %v129
  %vm145 = vcmp.eq.s32.totalorder %v121, %v129
  %vm146 = vcmp.eq.s32.totalorder %v122, %v129
  %vm147 = vcmp.eq.s32.totalorder %v123, %v129
  %vm148 = vcmp.eq.s32.totalorder %v118, %v132
  %vm149 = vcmp.eq.s32.totalorder %v119, %v132
  %vm150 = vcmp.eq.s32.totalorder %v120, %v132
  %vm151 = vcmp.eq.s32.totalorder %v121, %v132
  %vm152 = vcmp.eq.s32.totalorder %v122, %v132
  %vm153 = vcmp.eq.s32.totalorder %v123, %v132
  %vm154 = vcmp.eq.s32.totalorder %v118, %v135
  %vm155 = vcmp.eq.s32.totalorder %v119, %v135
  %vm156 = vcmp.eq.s32.totalorder %v120, %v135
  %vm157 = vcmp.eq.s32.totalorder %v121, %v135
  %vm158 = vcmp.eq.s32.totalorder %v122, %v135
  %vm159 = vcmp.eq.s32.totalorder %v123, %v135
  %v160 = vsel %vm136, 1, 0
  %v161 = vsel %vm137, 1, 0
  %v162 = vsel %vm138, 1, 0
  %v163 = vsel %vm139, 1, 0
  %v164 = vsel %vm140, 1, 0
  %v165 = vsel %vm141, 1, 0
  %v166 = vsel %vm142, 1, 0
  %v167 = vsel %vm143, 1, 0
  %v168 = vsel %vm144, 1, 0
  %v169 = vsel %vm145, 1, 0
  %v170 = vsel %vm146, 1, 0
  %v171 = vsel %vm147, 1, 0
  %v172 = vsel %vm148, 1, 0
  %v173 = vsel %vm149, 1, 0
  %v174 = vsel %vm150, 1, 0
  %v175 = vsel %vm151, 1, 0
  %v176 = vsel %vm152, 1, 0
  %v177 = vsel %vm153, 1, 0
  %v178 = vsel %vm154, 1, 0
  %v179 = vsel %vm155, 1, 0
  %v180 = vsel %vm156, 1, 0
  %v181 = vsel %vm157, 1, 0
  %v182 = vsel %vm158, 1, 0
  %v183 = vsel %vm159, 1, 0
  %v184 = vcvt.s32.f32 %v160
  %v185 = vcvt.s32.f32 %v161
  %v186 = vcvt.s32.f32 %v162
  %v187 = vcvt.s32.f32 %v163
  %v188 = vcvt.s32.f32 %v164
  %v189 = vcvt.s32.f32 %v165
  %v190 = vcvt.s32.f32 %v166
  %v191 = vcvt.s32.f32 %v167
  %v192 = vcvt.s32.f32 %v168
  %v193 = vcvt.s32.f32 %v169
  %v194 = vcvt.s32.f32 %v170
  %v195 = vcvt.s32.f32 %v171
  %v196 = vcvt.s32.f32 %v172
  %v197 = vcvt.s32.f32 %v173
  %v198 = vcvt.s32.f32 %v174
  %v199 = vcvt.s32.f32 %v175
  %v200 = vcvt.s32.f32 %v176
  %v201 = vcvt.s32.f32 %v177
  %v202 = vcvt.s32.f32 %v178
  %v203 = vcvt.s32.f32 %v179
  %v204 = vcvt.s32.f32 %v180
  %v205 = vcvt.s32.f32 %v181
  %v206 = vcvt.s32.f32 %v182
  %v207 = vcvt.s32.f32 %v183
  %208 = vmatprep.subr.mxu0 0.0
  %209 = vmatpush1.msra.mxu0 %v32
  %210 = vmatprep.subr.mxu0 0.0
  %211 = vmatpush1.msra.mxu0 %v31
  %212 = vmatprep.subr.mxu0 0.0
  %213 = vmatpush1.msra.mxu0 %v30
  %214 = vmatprep.subr.mxu0 0.0
  %215 = vmatpush1.msra.mxu0 %v29
  %216 = vmatprep.subr.mxu0 0.0
  %217 = vmatpush1.msra.mxu0 %v28
  %218 = vmatprep.subr.mxu0 0.0
  %219 = vmatpush1.msra.mxu0 %v27
  %220 = vmatprep.subr.mxu0 0.0
  %221 = vmatpush1.msra.mxu0 %v26
  %222 = vmatprep.subr.mxu0 0.0
  %223 = vmatpush1.msra.mxu0 %v25
  %224 = vmatprep.subr.mxu0 0.0
  %225 = vmatpush1.msra.mxu0 %v24
  %226 = vmatprep.subr.mxu0 0.0
  %227 = vmatpush1.msra.mxu0 %v23
  %228 = vmatprep.subr.mxu0 0.0
  %229 = vmatpush1.msra.mxu0 %v22
  %230 = vmatprep.subr.mxu0 0.0
  %231 = vmatpush1.msra.mxu0 %v21
  %232 = vmatprep.subr.mxu0 0.0
  %233 = vmatpush1.msra.mxu0 %v20
  %234 = vmatprep.subr.mxu0 0.0
  %235 = vmatpush1.msra.mxu0 %v19
  %236 = vmatprep.subr.mxu0 0.0
  %237 = vmatpush1.msra.mxu0 %v18
  %238 = vmatprep.subr.mxu0 0.0
  %239 = vmatpush1.msra.mxu0 %v17
  %240 = vmatprep.subr.mxu0 0.0
  %241 = vmatpush2.msra.mxu0 %v48
  %242 = vmatprep.subr.mxu0 0.0
  %243 = vmatpush2.msra.mxu0 %v47
  %244 = vmatprep.subr.mxu0 0.0
  %245 = vmatpush2.msra.mxu0 %v46
  %246 = vmatprep.subr.mxu0 0.0
  %247 = vmatpush2.msra.mxu0 %v45
  %248 = vmatprep.subr.mxu0 0.0
  %249 = vmatpush2.msra.mxu0 %v44
  %250 = vmatprep.subr.mxu0 0.0
  %251 = vmatpush2.msra.mxu0 %v43
  %252 = vmatprep.subr.mxu0 0.0
  %253 = vmatpush2.msra.mxu0 %v42
  %254 = vmatprep.subr.mxu0 0.0
  %255 = vmatpush2.msra.mxu0 %v41
  %256 = vmatprep.subr.mxu0 0.0
  %257 = vmatpush2.msra.mxu0 %v40
  %258 = vmatprep.subr.mxu0 0.0
  %259 = vmatpush2.msra.mxu0 %v39
  %260 = vmatprep.subr.mxu0 0.0
  %261 = vmatpush2.msra.mxu0 %v38
  %262 = vmatprep.subr.mxu0 0.0
  %263 = vmatpush2.msra.mxu0 %v37
  %264 = vmatprep.subr.mxu0 0.0
  %265 = vmatpush2.msra.mxu0 %v36
  %266 = vmatprep.subr.mxu0 0.0
  %267 = vmatpush2.msra.mxu0 %v35
  %268 = vmatprep.subr.mxu0 0.0
  %269 = vmatpush2.msra.mxu0 %v34
  %270 = vmatprep.subr.mxu0 0.0
  %271 = vmatpush2.msra.mxu0 %v33
  %272 = vmatprep.mubr.f32.mxu0 %v185
  %273 = vmatmul.mubr.f32.gmra.mxu0 %v184
  %v274 = vpop.f32.mrf.mxu0
  %v275 = vadd.f32 0.0, %v274
  %v276 = vpop.f32.mrf.mxu0
  %277 = vmatprep.mubr.f32.mxu0 %v191
  %278 = vmatmul.mubr.f32.gmra.mxu0 %v190
  %v279 = vpop.f32.mrf.mxu0
  %v280 = vadd.f32 0.0, %v279
  %v281 = vpop.f32.mrf.mxu0
  %282 = vmatprep.mubr.f32.mxu0 %v197
  %283 = vmatmul.mubr.f32.gmra.mxu0 %v196
  %v284 = vpop.f32.mrf.mxu0
  %v285 = vadd.f32 0.0, %v284
  %v286 = vpop.f32.mrf.mxu0
  %287 = vmatprep.mubr.f32.mxu0 %v203
  %288 = vmatmul.mubr.f32.gmra.mxu0 %v202
  %v289 = vpop.f32.mrf.mxu0
  %v290 = vadd.f32 0.0, %v289
  %v291 = vpop.f32.mrf.mxu0
  %292 = vdwg.mxu0
  %293 = vmatprep.subr.mxu0 0.0
  %294 = vmatpush1.msra.mxu0 %v64
  %295 = vmatprep.subr.mxu0 0.0
  %296 = vmatpush1.msra.mxu0 %v63
  %297 = vmatprep.subr.mxu0 0.0
  %298 = vmatpush1.msra.mxu0 %v62
  %299 = vmatprep.subr.mxu0 0.0
  %300 = vmatpush1.msra.mxu0 %v61
  %301 = vmatprep.subr.mxu0 0.0
  %302 = vmatpush1.msra.mxu0 %v60
  %303 = vmatprep.subr.mxu0 0.0
  %304 = vmatpush1.msra.mxu0 %v59
  %305 = vmatprep.subr.mxu0 0.0
  %306 = vmatpush1.msra.mxu0 %v58
  %307 = vmatprep.subr.mxu0 0.0
  %308 = vmatpush1.msra.mxu0 %v57
  %309 = vmatprep.subr.mxu0 0.0
  %310 = vmatpush1.msra.mxu0 %v56
  %311 = vmatprep.subr.mxu0 0.0
  %312 = vmatpush1.msra.mxu0 %v55
  %313 = vmatprep.subr.mxu0 0.0
  %314 = vmatpush1.msra.mxu0 %v54
  %315 = vmatprep.subr.mxu0 0.0
  %316 = vmatpush1.msra.mxu0 %v53
  %317 = vmatprep.subr.mxu0 0.0
  %318 = vmatpush1.msra.mxu0 %v52
  %319 = vmatprep.subr.mxu0 0.0
  %320 = vmatpush1.msra.mxu0 %v51
  %321 = vmatprep.subr.mxu0 0.0
  %322 = vmatpush1.msra.mxu0 %v50
  %323 = vmatprep.subr.mxu0 0.0
  %324 = vmatpush1.msra.mxu0 %v49
  %325 = vmatprep.subr.mxu0 0.0
  %326 = vmatpush2.msra.mxu0 %v80
  %327 = vmatprep.subr.mxu0 0.0
  %328 = vmatpush2.msra.mxu0 %v79
  %329 = vmatprep.subr.mxu0 0.0
  %330 = vmatpush2.msra.mxu0 %v78
  %331 = vmatprep.subr.mxu0 0.0
  %332 = vmatpush2.msra.mxu0 %v77
  %333 = vmatprep.subr.mxu0 0.0
  %334 = vmatpush2.msra.mxu0 %v76
  %335 = vmatprep.subr.mxu0 0.0
  %336 = vmatpush2.msra.mxu0 %v75
  %337 = vmatprep.subr.mxu0 0.0
  %338 = vmatpush2.msra.mxu0 %v74
  %339 = vmatprep.subr.mxu0 0.0
  %340 = vmatpush2.msra.mxu0 %v73
  %341 = vmatprep.subr.mxu0 0.0
  %342 = vmatpush2.msra.mxu0 %v72
  %343 = vmatprep.subr.mxu0 0.0
  %344 = vmatpush2.msra.mxu0 %v71
  %345 = vmatprep.subr.mxu0 0.0
  %346 = vmatpush2.msra.mxu0 %v70
  %347 = vmatprep.subr.mxu0 0.0
  %348 = vmatpush2.msra.mxu0 %v69
  %349 = vmatprep.subr.mxu0 0.0
  %350 = vmatpush2.msra.mxu0 %v68
  %351 = vmatprep.subr.mxu0 0.0
  %352 = vmatpush2.msra.mxu0 %v67
  %353 = vmatprep.subr.mxu0 0.0
  %354 = vmatpush2.msra.mxu0 %v66
  %355 = vmatprep.subr.mxu0 0.0
  %356 = vmatpush2.msra.mxu0 %v65
  %357 = vmatprep.mubr.f32.mxu0 %v187
  %358 = vmatmul.mubr.f32.gmra.mxu0 %v186
  %v359 = vpop.f32.mrf.mxu0
  %v360 = vadd.f32 %v275, %v359
  %v361 = vpop.f32.mrf.mxu0
  %362 = vmatprep.mubr.f32.mxu0 %v193
  %363 = vmatmul.mubr.f32.gmra.mxu0 %v192
  %v364 = vpop.f32.mrf.mxu0
  %v365 = vadd.f32 %v280, %v364
  %v366 = vpop.f32.mrf.mxu0
  %367 = vmatprep.mubr.f32.mxu0 %v199
  %368 = vmatmul.mubr.f32.gmra.mxu0 %v198
  %v369 = vpop.f32.mrf.mxu0
  %v370 = vadd.f32 %v285, %v369
  %v371 = vpop.f32.mrf.mxu0
  %372 = vmatprep.mubr.f32.mxu0 %v205
  %373 = vmatmul.mubr.f32.gmra.mxu0 %v204
  %v374 = vpop.f32.mrf.mxu0
  %v375 = vadd.f32 %v290, %v374
  %v376 = vpop.f32.mrf.mxu0
  %377 = vdwg.mxu0
  %378 = vmatprep.subr.mxu0 0.0
  %379 = vmatpush1.msra.mxu0 %v96
  %380 = vmatprep.subr.mxu0 0.0
  %381 = vmatpush1.msra.mxu0 %v95
  %382 = vmatprep.subr.mxu0 0.0
  %383 = vmatpush1.msra.mxu0 %v94
  %384 = vmatprep.subr.mxu0 0.0
  %385 = vmatpush1.msra.mxu0 %v93
  %386 = vmatprep.subr.mxu0 0.0
  %387 = vmatpush1.msra.mxu0 %v92
  %388 = vmatprep.subr.mxu0 0.0
  %389 = vmatpush1.msra.mxu0 %v91
  %390 = vmatprep.subr.mxu0 0.0
  %391 = vmatpush1.msra.mxu0 %v90
  %392 = vmatprep.subr.mxu0 0.0
  %393 = vmatpush1.msra.mxu0 %v89
  %394 = vmatprep.subr.mxu0 0.0
  %395 = vmatpush1.msra.mxu0 %v88
  %396 = vmatprep.subr.mxu0 0.0
  %397 = vmatpush1.msra.mxu0 %v87
  %398 = vmatprep.subr.mxu0 0.0
  %399 = vmatpush1.msra.mxu0 %v86
  %400 = vmatprep.subr.mxu0 0.0
  %401 = vmatpush1.msra.mxu0 %v85
  %402 = vmatprep.subr.mxu0 0.0
  %403 = vmatpush1.msra.mxu0 %v84
  %404 = vmatprep.subr.mxu0 0.0
  %405 = vmatpush1.msra.mxu0 %v83
  %406 = vmatprep.subr.mxu0 0.0
  %407 = vmatpush1.msra.mxu0 %v82
  %408 = vmatprep.subr.mxu0 0.0
  %409 = vmatpush1.msra.mxu0 %v81
  %410 = vmatprep.subr.mxu0 0.0
  %411 = vmatpush2.msra.mxu0 %v112
  %412 = vmatprep.subr.mxu0 0.0
  %413 = vmatpush2.msra.mxu0 %v111
  %414 = vmatprep.subr.mxu0 0.0
  %415 = vmatpush2.msra.mxu0 %v110
  %416 = vmatprep.subr.mxu0 0.0
  %417 = vmatpush2.msra.mxu0 %v109
  %418 = vmatprep.subr.mxu0 0.0
  %419 = vmatpush2.msra.mxu0 %v108
  %420 = vmatprep.subr.mxu0 0.0
  %421 = vmatpush2.msra.mxu0 %v107
  %422 = vmatprep.subr.mxu0 0.0
  %423 = vmatpush2.msra.mxu0 %v106
  %424 = vmatprep.subr.mxu0 0.0
  %425 = vmatpush2.msra.mxu0 %v105
  %426 = vmatprep.subr.mxu0 0.0
  %427 = vmatpush2.msra.mxu0 %v104
  %428 = vmatprep.subr.mxu0 0.0
  %429 = vmatpush2.msra.mxu0 %v103
  %430 = vmatprep.subr.mxu0 0.0
  %431 = vmatpush2.msra.mxu0 %v102
  %432 = vmatprep.subr.mxu0 0.0
  %433 = vmatpush2.msra.mxu0 %v101
  %434 = vmatprep.subr.mxu0 0.0
  %435 = vmatpush2.msra.mxu0 %v100
  %436 = vmatprep.subr.mxu0 0.0
  %437 = vmatpush2.msra.mxu0 %v99
  %438 = vmatprep.subr.mxu0 0.0
  %439 = vmatpush2.msra.mxu0 %v98
  %440 = vmatprep.subr.mxu0 0.0
  %441 = vmatpush2.msra.mxu0 %v97
  %442 = vmatprep.mubr.f32.mxu0 %v189
  %443 = vmatmul.mubr.f32.gmra.mxu0 %v188
  %v444 = vpop.f32.mrf.mxu0
  %v445 = vadd.f32 %v360, %v444
  %v446 = vpop.f32.mrf.mxu0
  %447 = vmatprep.mubr.f32.mxu0 %v195
  %448 = vmatmul.mubr.f32.gmra.mxu0 %v194
  %v449 = vpop.f32.mrf.mxu0
  %v450 = vadd.f32 %v365, %v449
  %v451 = vpop.f32.mrf.mxu0
  %452 = vmatprep.mubr.f32.mxu0 %v201
  %453 = vmatmul.mubr.f32.gmra.mxu0 %v200
  %v454 = vpop.f32.mrf.mxu0
  %v455 = vadd.f32 %v370, %v454
  %v456 = vpop.f32.mrf.mxu0
  %457 = vmatprep.mubr.f32.mxu0 %v207
  %458 = vmatmul.mubr.f32.gmra.mxu0 %v206
  %v459 = vpop.f32.mrf.mxu0
  %v460 = vadd.f32 %v375, %v459
  %v461 = vpop.f32.mrf.mxu0
  %462 = vdwg.mxu0
  %v463 = vld [vmem:[%s1] sm:$0xff]
  %v464 = vld [vmem:[%s1 + $0x8] sm:$0xff]
  %v465 = vld [vmem:[%s1 + $0x10] sm:$0xff]
  %v466 = vld [vmem:[%s1 + $0x18] sm:$0xff]
  %v467 = vld [vmem:[%s1 + $0x20] sm:$0xff]
  %v468 = vld [vmem:[%s1 + $0x28] sm:$0xff]
  %v469 = vld [vmem:[%s1 + $0x30] sm:$0xff]
  %v470 = vld [vmem:[%s1 + $0x38] sm:$0xff]
  %471 = vset.pattern.permute.xlu0 0
  %472 = vperm.xlu0 %471, %v463
  %v473 = vpop.permute.xlu0 %472
  %474 = vset.pattern.permute.xlu0 0
  %475 = vperm.xlu0 %474, %v464
  %v476 = vpop.permute.xlu0 %475
  %477 = vset.pattern.permute.xlu0 0
  %478 = vperm.xlu0 %477, %v465
  %v479 = vpop.permute.xlu0 %478
  %480 = vset.pattern.permute.xlu0 0
  %481 = vperm.xlu0 %480, %v466
  %v482 = vpop.permute.xlu0 %481
  %483 = vset.pattern.permute.xlu0 0
  %484 = vperm.xlu0 %483, %v467
  %v485 = vpop.permute.xlu0 %484
  %486 = vset.pattern.permute.xlu0 0
  %487 = vperm.xlu0 %486, %v468
  %v488 = vpop.permute.xlu0 %487
  %489 = vset.pattern.permute.xlu0 0
  %490 = vperm.xlu0 %489, %v469
  %v491 = vpop.permute.xlu0 %490
  %492 = vset.pattern.permute.xlu0 0
  %493 = vperm.xlu0 %492, %v470
  %v494 = vpop.permute.xlu0 %493
  %vm495 = vcmp.eq.s32.totalorder %v118, %v473
  %vm496 = vcmp.eq.s32.totalorder %v119, %v473
  %vm497 = vcmp.eq.s32.totalorder %v120, %v473
  %vm498 = vcmp.eq.s32.totalorder %v121, %v473
  %vm499 = vcmp.eq.s32.totalorder %v122, %v473
  %vm500 = vcmp.eq.s32.totalorder %v123, %v473
  %vm501 = vcmp.eq.s32.totalorder %v118, %v476
  %vm502 = vcmp.eq.s32.totalorder %v119, %v476
  %vm503 = vcmp.eq.s32.totalorder %v120, %v476
  %vm504 = vcmp.eq.s32.totalorder %v121, %v476
  %vm505 = vcmp.eq.s32.totalorder %v122, %v476
  %vm506 = vcmp.eq.s32.totalorder %v123, %v476
  %vm507 = vcmp.eq.s32.totalorder %v118, %v479
  %vm508 = vcmp.eq.s32.totalorder %v119, %v479
  %vm509 = vcmp.eq.s32.totalorder %v120, %v479
  %vm510 = vcmp.eq.s32.totalorder %v121, %v479
  %vm511 = vcmp.eq.s32.totalorder %v122, %v479
  %vm512 = vcmp.eq.s32.totalorder %v123, %v479
  %vm513 = vcmp.eq.s32.totalorder %v118, %v482
  %vm514 = vcmp.eq.s32.totalorder %v119, %v482
  %vm515 = vcmp.eq.s32.totalorder %v120, %v482
  %vm516 = vcmp.eq.s32.totalorder %v121, %v482
  %vm517 = vcmp.eq.s32.totalorder %v122, %v482
  %vm518 = vcmp.eq.s32.totalorder %v123, %v482
  %vm519 = vcmp.eq.s32.totalorder %v118, %v485
  %vm520 = vcmp.eq.s32.totalorder %v119, %v485
  %vm521 = vcmp.eq.s32.totalorder %v120, %v485
  %vm522 = vcmp.eq.s32.totalorder %v121, %v485
  %vm523 = vcmp.eq.s32.totalorder %v122, %v485
  %vm524 = vcmp.eq.s32.totalorder %v123, %v485
  %vm525 = vcmp.eq.s32.totalorder %v118, %v488
  %vm526 = vcmp.eq.s32.totalorder %v119, %v488
  %vm527 = vcmp.eq.s32.totalorder %v120, %v488
  %vm528 = vcmp.eq.s32.totalorder %v121, %v488
  %vm529 = vcmp.eq.s32.totalorder %v122, %v488
  %vm530 = vcmp.eq.s32.totalorder %v123, %v488
  %vm531 = vcmp.eq.s32.totalorder %v118, %v491
  %vm532 = vcmp.eq.s32.totalorder %v119, %v491
  %vm533 = vcmp.eq.s32.totalorder %v120, %v491
  %vm534 = vcmp.eq.s32.totalorder %v121, %v491
  %vm535 = vcmp.eq.s32.totalorder %v122, %v491
  %vm536 = vcmp.eq.s32.totalorder %v123, %v491
  %vm537 = vcmp.eq.s32.totalorder %v118, %v494
  %vm538 = vcmp.eq.s32.totalorder %v119, %v494
  %vm539 = vcmp.eq.s32.totalorder %v120, %v494
  %vm540 = vcmp.eq.s32.totalorder %v121, %v494
  %vm541 = vcmp.eq.s32.totalorder %v122, %v494
  %vm542 = vcmp.eq.s32.totalorder %v123, %v494
  %v543 = vsel %vm495, 1, 0
  %v544 = vsel %vm496, 1, 0
  %v545 = vsel %vm497, 1, 0
  %v546 = vsel %vm498, 1, 0
  %v547 = vsel %vm499, 1, 0
  %v548 = vsel %vm500, 1, 0
  %v549 = vsel %vm501, 1, 0
  %v550 = vsel %vm502, 1, 0
  %v551 = vsel %vm503, 1, 0
  %v552 = vsel %vm504, 1, 0
  %v553 = vsel %vm505, 1, 0
  %v554 = vsel %vm506, 1, 0
  %v555 = vsel %vm507, 1, 0
  %v556 = vsel %vm508, 1, 0
  %v557 = vsel %vm509, 1, 0
  %v558 = vsel %vm510, 1, 0
  %v559 = vsel %vm511, 1, 0
  %v560 = vsel %vm512, 1, 0
  %v561 = vsel %vm513, 1, 0
  %v562 = vsel %vm514, 1, 0
  %v563 = vsel %vm515, 1, 0
  %v564 = vsel %vm516, 1, 0
  %v565 = vsel %vm517, 1, 0
  %v566 = vsel %vm518, 1, 0
  %v567 = vsel %vm519, 1, 0
  %v568 = vsel %vm520, 1, 0
  %v569 = vsel %vm521, 1, 0
  %v570 = vsel %vm522, 1, 0
  %v571 = vsel %vm523, 1, 0
  %v572 = vsel %vm524, 1, 0
  %v573 = vsel %vm525, 1, 0
  %v574 = vsel %vm526, 1, 0
  %v575 = vsel %vm527, 1, 0
  %v576 = vsel %vm528, 1, 0
  %v577 = vsel %vm529, 1, 0
  %v578 = vsel %vm530, 1, 0
  %v579 = vsel %vm531, 1, 0
  %v580 = vsel %vm532, 1, 0
  %v581 = vsel %vm533, 1, 0
  %v582 = vsel %vm534, 1, 0
  %v583 = vsel %vm535, 1, 0
  %v584 = vsel %vm536, 1, 0
  %v585 = vsel %vm537, 1, 0
  %v586 = vsel %vm538, 1, 0
  %v587 = vsel %vm539, 1, 0
  %v588 = vsel %vm540, 1, 0
  %v589 = vsel %vm541, 1, 0
  %v590 = vsel %vm542, 1, 0
  %v591 = vcvt.s32.f32 %v543
  %v592 = vcvt.s32.f32 %v544
  %v593 = vcvt.s32.f32 %v545
  %v594 = vcvt.s32.f32 %v546
  %v595 = vcvt.s32.f32 %v547
  %v596 = vcvt.s32.f32 %v548
  %v597 = vcvt.s32.f32 %v549
  %v598 = vcvt.s32.f32 %v550
  %v599 = vcvt.s32.f32 %v551
  %v600 = vcvt.s32.f32 %v552
  %v601 = vcvt.s32.f32 %v553
  %v602 = vcvt.s32.f32 %v554
  %v603 = vcvt.s32.f32 %v555
  %v604 = vcvt.s32.f32 %v556
  %v605 = vcvt.s32.f32 %v557
  %v606 = vcvt.s32.f32 %v558
  %v607 = vcvt.s32.f32 %v559
  %v608 = vcvt.s32.f32 %v560
  %v609 = vcvt.s32.f32 %v561
  %v610 = vcvt.s32.f32 %v562
  %v611 = vcvt.s32.f32 %v563
  %v612 = vcvt.s32.f32 %v564
  %v613 = vcvt.s32.f32 %v565
  %v614 = vcvt.s32.f32 %v566
  %v615 = vcvt.s32.f32 %v567
  %v616 = vcvt.s32.f32 %v568
  %v617 = vcvt.s32.f32 %v569
  %v618 = vcvt.s32.f32 %v570
  %v619 = vcvt.s32.f32 %v571
  %v620 = vcvt.s32.f32 %v572
  %v621 = vcvt.s32.f32 %v573
  %v622 = vcvt.s32.f32 %v574
  %v623 = vcvt.s32.f32 %v575
  %v624 = vcvt.s32.f32 %v576
  %v625 = vcvt.s32.f32 %v577
  %v626 = vcvt.s32.f32 %v578
  %v627 = vcvt.s32.f32 %v579
  %v628 = vcvt.s32.f32 %v580
  %v629 = vcvt.s32.f32 %v581
  %v630 = vcvt.s32.f32 %v582
  %v631 = vcvt.s32.f32 %v583
  %v632 = vcvt.s32.f32 %v584
  %v633 = vcvt.s32.f32 %v585
  %v634 = vcvt.s32.f32 %v586
  %v635 = vcvt.s32.f32 %v587
  %v636 = vcvt.s32.f32 %v588
  %v637 = vcvt.s32.f32 %v589
  %v638 = vcvt.s32.f32 %v590
  %639 = vmatprep.subr.mxu0 0.0
  %640 = vmatpush1.msra.mxu0 %v32
  %641 = vmatprep.subr.mxu0 0.0
  %642 = vmatpush1.msra.mxu0 %v31
  %643 = vmatprep.subr.mxu0 0.0
  %644 = vmatpush1.msra.mxu0 %v30
  %645 = vmatprep.subr.mxu0 0.0
  %646 = vmatpush1.msra.mxu0 %v29
  %647 = vmatprep.subr.mxu0 0.0
  %648 = vmatpush1.msra.mxu0 %v28
  %649 = vmatprep.subr.mxu0 0.0
  %650 = vmatpush1.msra.mxu0 %v27
  %651 = vmatprep.subr.mxu0 0.0
  %652 = vmatpush1.msra.mxu0 %v26
  %653 = vmatprep.subr.mxu0 0.0
  %654 = vmatpush1.msra.mxu0 %v25
  %655 = vmatprep.subr.mxu0 0.0
  %656 = vmatpush1.msra.mxu0 %v24
  %657 = vmatprep.subr.mxu0 0.0
  %658 = vmatpush1.msra.mxu0 %v23
  %659 = vmatprep.subr.mxu0 0.0
  %660 = vmatpush1.msra.mxu0 %v22
  %661 = vmatprep.subr.mxu0 0.0
  %662 = vmatpush1.msra.mxu0 %v21
  %663 = vmatprep.subr.mxu0 0.0
  %664 = vmatpush1.msra.mxu0 %v20
  %665 = vmatprep.subr.mxu0 0.0
  %666 = vmatpush1.msra.mxu0 %v19
  %667 = vmatprep.subr.mxu0 0.0
  %668 = vmatpush1.msra.mxu0 %v18
  %669 = vmatprep.subr.mxu0 0.0
  %670 = vmatpush1.msra.mxu0 %v17
  %671 = vmatprep.subr.mxu0 0.0
  %672 = vmatpush2.msra.mxu0 %v48
  %673 = vmatprep.subr.mxu0 0.0
  %674 = vmatpush2.msra.mxu0 %v47
  %675 = vmatprep.subr.mxu0 0.0
  %676 = vmatpush2.msra.mxu0 %v46
  %677 = vmatprep.subr.mxu0 0.0
  %678 = vmatpush2.msra.mxu0 %v45
  %679 = vmatprep.subr.mxu0 0.0
  %680 = vmatpush2.msra.mxu0 %v44
  %681 = vmatprep.subr.mxu0 0.0
  %682 = vmatpush2.msra.mxu0 %v43
  %683 = vmatprep.subr.mxu0 0.0
  %684 = vmatpush2.msra.mxu0 %v42
  %685 = vmatprep.subr.mxu0 0.0
  %686 = vmatpush2.msra.mxu0 %v41
  %687 = vmatprep.subr.mxu0 0.0
  %688 = vmatpush2.msra.mxu0 %v40
  %689 = vmatprep.subr.mxu0 0.0
  %690 = vmatpush2.msra.mxu0 %v39
  %691 = vmatprep.subr.mxu0 0.0
  %692 = vmatpush2.msra.mxu0 %v38
  %693 = vmatprep.subr.mxu0 0.0
  %694 = vmatpush2.msra.mxu0 %v37
  %695 = vmatprep.subr.mxu0 0.0
  %696 = vmatpush2.msra.mxu0 %v36
  %697 = vmatprep.subr.mxu0 0.0
  %698 = vmatpush2.msra.mxu0 %v35
  %699 = vmatprep.subr.mxu0 0.0
  %700 = vmatpush2.msra.mxu0 %v34
  %701 = vmatprep.subr.mxu0 0.0
  %702 = vmatpush2.msra.mxu0 %v33
  %703 = vmatprep.mubr.f32.mxu0 %v592
  %704 = vmatmul.mubr.f32.gmra.mxu0 %v591
  %v705 = vpop.f32.mrf.mxu0
  %v706 = vadd.f32 0.0, %v705
  %v707 = vpop.f32.mrf.mxu0
  %708 = vmatprep.mubr.f32.mxu0 %v598
  %709 = vmatmul.mubr.f32.gmra.mxu0 %v597
  %v710 = vpop.f32.mrf.mxu0
  %v711 = vadd.f32 0.0, %v710
  %v712 = vpop.f32.mrf.mxu0
  %713 = vmatprep.mubr.f32.mxu0 %v604
  %714 = vmatmul.mubr.f32.gmra.mxu0 %v603
  %v715 = vpop.f32.mrf.mxu0
  %v716 = vadd.f32 0.0, %v715
  %v717 = vpop.f32.mrf.mxu0
  %718 = vmatprep.mubr.f32.mxu0 %v610
  %719 = vmatmul.mubr.f32.gmra.mxu0 %v609
  %v720 = vpop.f32.mrf.mxu0
  %v721 = vadd.f32 0.0, %v720
  %v722 = vpop.f32.mrf.mxu0
  %723 = vmatprep.mubr.f32.mxu0 %v616
  %724 = vmatmul.mubr.f32.gmra.mxu0 %v615
  %v725 = vpop.f32.mrf.mxu0
  %v726 = vadd.f32 0.0, %v725
  %v727 = vpop.f32.mrf.mxu0
  %728 = vmatprep.mubr.f32.mxu0 %v622
  %729 = vmatmul.mubr.f32.gmra.mxu0 %v621
  %v730 = vpop.f32.mrf.mxu0
  %v731 = vadd.f32 0.0, %v730
  %v732 = vpop.f32.mrf.mxu0
  %733 = vmatprep.mubr.f32.mxu0 %v628
  %734 = vmatmul.mubr.f32.gmra.mxu0 %v627
  %v735 = vpop.f32.mrf.mxu0
  %v736 = vadd.f32 0.0, %v735
  %v737 = vpop.f32.mrf.mxu0
  %738 = vmatprep.mubr.f32.mxu0 %v634
  %739 = vmatmul.mubr.f32.gmra.mxu0 %v633
  %v740 = vpop.f32.mrf.mxu0
  %v741 = vadd.f32 0.0, %v740
  %v742 = vpop.f32.mrf.mxu0
  %743 = vdwg.mxu0
  %744 = vmatprep.subr.mxu0 0.0
  %745 = vmatpush1.msra.mxu0 %v64
  %746 = vmatprep.subr.mxu0 0.0
  %747 = vmatpush1.msra.mxu0 %v63
  %748 = vmatprep.subr.mxu0 0.0
  %749 = vmatpush1.msra.mxu0 %v62
  %750 = vmatprep.subr.mxu0 0.0
  %751 = vmatpush1.msra.mxu0 %v61
  %752 = vmatprep.subr.mxu0 0.0
  %753 = vmatpush1.msra.mxu0 %v60
  %754 = vmatprep.subr.mxu0 0.0
  %755 = vmatpush1.msra.mxu0 %v59
  %756 = vmatprep.subr.mxu0 0.0
  %757 = vmatpush1.msra.mxu0 %v58
  %758 = vmatprep.subr.mxu0 0.0
  %759 = vmatpush1.msra.mxu0 %v57
  %760 = vmatprep.subr.mxu0 0.0
  %761 = vmatpush1.msra.mxu0 %v56
  %762 = vmatprep.subr.mxu0 0.0
  %763 = vmatpush1.msra.mxu0 %v55
  %764 = vmatprep.subr.mxu0 0.0
  %765 = vmatpush1.msra.mxu0 %v54
  %766 = vmatprep.subr.mxu0 0.0
  %767 = vmatpush1.msra.mxu0 %v53
  %768 = vmatprep.subr.mxu0 0.0
  %769 = vmatpush1.msra.mxu0 %v52
  %770 = vmatprep.subr.mxu0 0.0
  %771 = vmatpush1.msra.mxu0 %v51
  %772 = vmatprep.subr.mxu0 0.0
  %773 = vmatpush1.msra.mxu0 %v50
  %774 = vmatprep.subr.mxu0 0.0
  %775 = vmatpush1.msra.mxu0 %v49
  %776 = vmatprep.subr.mxu0 0.0
  %777 = vmatpush2.msra.mxu0 %v80
  %778 = vmatprep.subr.mxu0 0.0
  %779 = vmatpush2.msra.mxu0 %v79
  %780 = vmatprep.subr.mxu0 0.0
  %781 = vmatpush2.msra.mxu0 %v78
  %782 = vmatprep.subr.mxu0 0.0
  %783 = vmatpush2.msra.mxu0 %v77
  %784 = vmatprep.subr.mxu0 0.0
  %785 = vmatpush2.msra.mxu0 %v76
  %786 = vmatprep.subr.mxu0 0.0
  %787 = vmatpush2.msra.mxu0 %v75
  %788 = vmatprep.subr.mxu0 0.0
  %789 = vmatpush2.msra.mxu0 %v74
  %790 = vmatprep.subr.mxu0 0.0
  %791 = vmatpush2.msra.mxu0 %v73
  %792 = vmatprep.subr.mxu0 0.0
  %793 = vmatpush2.msra.mxu0 %v72
  %794 = vmatprep.subr.mxu0 0.0
  %795 = vmatpush2.msra.mxu0 %v71
  %796 = vmatprep.subr.mxu0 0.0
  %797 = vmatpush2.msra.mxu0 %v70
  %798 = vmatprep.subr.mxu0 0.0
  %799 = vmatpush2.msra.mxu0 %v69
  %800 = vmatprep.subr.mxu0 0.0
  %801 = vmatpush2.msra.mxu0 %v68
  %802 = vmatprep.subr.mxu0 0.0
  %803 = vmatpush2.msra.mxu0 %v67
  %804 = vmatprep.subr.mxu0 0.0
  %805 = vmatpush2.msra.mxu0 %v66
  %806 = vmatprep.subr.mxu0 0.0
  %807 = vmatpush2.msra.mxu0 %v65
  %808 = vmatprep.mubr.f32.mxu0 %v594
  %809 = vmatmul.mubr.f32.gmra.mxu0 %v593
  %v810 = vpop.f32.mrf.mxu0
  %v811 = vadd.f32 %v706, %v810
  %v812 = vpop.f32.mrf.mxu0
  %813 = vmatprep.mubr.f32.mxu0 %v600
  %814 = vmatmul.mubr.f32.gmra.mxu0 %v599
  %v815 = vpop.f32.mrf.mxu0
  %v816 = vadd.f32 %v711, %v815
  %v817 = vpop.f32.mrf.mxu0
  %818 = vmatprep.mubr.f32.mxu0 %v606
  %819 = vmatmul.mubr.f32.gmra.mxu0 %v605
  %v820 = vpop.f32.mrf.mxu0
  %v821 = vadd.f32 %v716, %v820
  %v822 = vpop.f32.mrf.mxu0
  %823 = vmatprep.mubr.f32.mxu0 %v612
  %824 = vmatmul.mubr.f32.gmra.mxu0 %v611
  %v825 = vpop.f32.mrf.mxu0
  %v826 = vadd.f32 %v721, %v825
  %v827 = vpop.f32.mrf.mxu0
  %828 = vmatprep.mubr.f32.mxu0 %v618
  %829 = vmatmul.mubr.f32.gmra.mxu0 %v617
  %v830 = vpop.f32.mrf.mxu0
  %v831 = vadd.f32 %v726, %v830
  %v832 = vpop.f32.mrf.mxu0
  %833 = vmatprep.mubr.f32.mxu0 %v624
  %834 = vmatmul.mubr.f32.gmra.mxu0 %v623
  %v835 = vpop.f32.mrf.mxu0
  %v836 = vadd.f32 %v731, %v835
  %v837 = vpop.f32.mrf.mxu0
  %838 = vmatprep.mubr.f32.mxu0 %v630
  %839 = vmatmul.mubr.f32.gmra.mxu0 %v629
  %v840 = vpop.f32.mrf.mxu0
  %v841 = vadd.f32 %v736, %v840
  %v842 = vpop.f32.mrf.mxu0
  %843 = vmatprep.mubr.f32.mxu0 %v636
  %844 = vmatmul.mubr.f32.gmra.mxu0 %v635
  %v845 = vpop.f32.mrf.mxu0
  %v846 = vadd.f32 %v741, %v845
  %v847 = vpop.f32.mrf.mxu0
  %848 = vdwg.mxu0
  %849 = vmatprep.subr.mxu0 0.0
  %850 = vmatpush1.msra.mxu0 %v96
  %851 = vmatprep.subr.mxu0 0.0
  %852 = vmatpush1.msra.mxu0 %v95
  %853 = vmatprep.subr.mxu0 0.0
  %854 = vmatpush1.msra.mxu0 %v94
  %855 = vmatprep.subr.mxu0 0.0
  %856 = vmatpush1.msra.mxu0 %v93
  %857 = vmatprep.subr.mxu0 0.0
  %858 = vmatpush1.msra.mxu0 %v92
  %859 = vmatprep.subr.mxu0 0.0
  %860 = vmatpush1.msra.mxu0 %v91
  %861 = vmatprep.subr.mxu0 0.0
  %862 = vmatpush1.msra.mxu0 %v90
  %863 = vmatprep.subr.mxu0 0.0
  %864 = vmatpush1.msra.mxu0 %v89
  %865 = vmatprep.subr.mxu0 0.0
  %866 = vmatpush1.msra.mxu0 %v88
  %867 = vmatprep.subr.mxu0 0.0
  %868 = vmatpush1.msra.mxu0 %v87
  %869 = vmatprep.subr.mxu0 0.0
  %870 = vmatpush1.msra.mxu0 %v86
  %871 = vmatprep.subr.mxu0 0.0
  %872 = vmatpush1.msra.mxu0 %v85
  %873 = vmatprep.subr.mxu0 0.0
  %874 = vmatpush1.msra.mxu0 %v84
  %875 = vmatprep.subr.mxu0 0.0
  %876 = vmatpush1.msra.mxu0 %v83
  %877 = vmatprep.subr.mxu0 0.0
  %878 = vmatpush1.msra.mxu0 %v82
  %879 = vmatprep.subr.mxu0 0.0
  %880 = vmatpush1.msra.mxu0 %v81
  %881 = vmatprep.subr.mxu0 0.0
  %882 = vmatpush2.msra.mxu0 %v112
  %883 = vmatprep.subr.mxu0 0.0
  %884 = vmatpush2.msra.mxu0 %v111
  %885 = vmatprep.subr.mxu0 0.0
  %886 = vmatpush2.msra.mxu0 %v110
  %887 = vmatprep.subr.mxu0 0.0
  %888 = vmatpush2.msra.mxu0 %v109
  %889 = vmatprep.subr.mxu0 0.0
  %890 = vmatpush2.msra.mxu0 %v108
  %891 = vmatprep.subr.mxu0 0.0
  %892 = vmatpush2.msra.mxu0 %v107
  %893 = vmatprep.subr.mxu0 0.0
  %894 = vmatpush2.msra.mxu0 %v106
  %895 = vmatprep.subr.mxu0 0.0
  %896 = vmatpush2.msra.mxu0 %v105
  %897 = vmatprep.subr.mxu0 0.0
  %898 = vmatpush2.msra.mxu0 %v104
  %899 = vmatprep.subr.mxu0 0.0
  %900 = vmatpush2.msra.mxu0 %v103
  %901 = vmatprep.subr.mxu0 0.0
  %902 = vmatpush2.msra.mxu0 %v102
  %903 = vmatprep.subr.mxu0 0.0
  %904 = vmatpush2.msra.mxu0 %v101
  %905 = vmatprep.subr.mxu0 0.0
  %906 = vmatpush2.msra.mxu0 %v100
  %907 = vmatprep.subr.mxu0 0.0
  %908 = vmatpush2.msra.mxu0 %v99
  %909 = vmatprep.subr.mxu0 0.0
  %910 = vmatpush2.msra.mxu0 %v98
  %911 = vmatprep.subr.mxu0 0.0
  %912 = vmatpush2.msra.mxu0 %v97
  %913 = vmatprep.mubr.f32.mxu0 %v596
  %914 = vmatmul.mubr.f32.gmra.mxu0 %v595
  %v915 = vpop.f32.mrf.mxu0
  %v916 = vadd.f32 %v811, %v915
  %v917 = vpop.f32.mrf.mxu0
  %918 = vmatprep.mubr.f32.mxu0 %v602
  %919 = vmatmul.mubr.f32.gmra.mxu0 %v601
  %v920 = vpop.f32.mrf.mxu0
  %v921 = vadd.f32 %v816, %v920
  %v922 = vpop.f32.mrf.mxu0
  %923 = vmatprep.mubr.f32.mxu0 %v608
  %924 = vmatmul.mubr.f32.gmra.mxu0 %v607
  %v925 = vpop.f32.mrf.mxu0
  %v926 = vadd.f32 %v821, %v925
  %v927 = vpop.f32.mrf.mxu0
  %928 = vmatprep.mubr.f32.mxu0 %v614
  %929 = vmatmul.mubr.f32.gmra.mxu0 %v613
  %v930 = vpop.f32.mrf.mxu0
  %v931 = vadd.f32 %v826, %v930
  %v932 = vpop.f32.mrf.mxu0
  %933 = vmatprep.mubr.f32.mxu0 %v620
  %934 = vmatmul.mubr.f32.gmra.mxu0 %v619
  %v935 = vpop.f32.mrf.mxu0
  %v936 = vadd.f32 %v831, %v935
  %v937 = vpop.f32.mrf.mxu0
  %938 = vmatprep.mubr.f32.mxu0 %v626
  %939 = vmatmul.mubr.f32.gmra.mxu0 %v625
  %v940 = vpop.f32.mrf.mxu0
  %v941 = vadd.f32 %v836, %v940
  %v942 = vpop.f32.mrf.mxu0
  %943 = vmatprep.mubr.f32.mxu0 %v632
  %944 = vmatmul.mubr.f32.gmra.mxu0 %v631
  %v945 = vpop.f32.mrf.mxu0
  %v946 = vadd.f32 %v841, %v945
  %v947 = vpop.f32.mrf.mxu0
  %948 = vmatprep.mubr.f32.mxu0 %v638
  %949 = vmatmul.mubr.f32.gmra.mxu0 %v637
  %v950 = vpop.f32.mrf.mxu0
  %v951 = vadd.f32 %v846, %v950
  %v952 = vpop.f32.mrf.mxu0
  %953 = vdwg.mxu0
  %v954 = vld [vmem:[%s2] sm:$0xff]
  %v955 = vld [vmem:[%s2 + $0x8] sm:$0xff]
  %v956 = vld [vmem:[%s2 + $0x10] sm:$0xff]
  %v957 = vld [vmem:[%s2 + $0x18] sm:$0xff]
  %v958 = vld [vmem:[%s2 + $0x20] sm:$0xff]
  %v959 = vld [vmem:[%s2 + $0x28] sm:$0xff]
  %v960 = vld [vmem:[%s2 + $0x30] sm:$0xff]
  %v961 = vld [vmem:[%s2 + $0x38] sm:$0xff]
  %962 = vset.pattern.permute.xlu0 0
  %963 = vperm.xlu0 %962, %v954
  %v964 = vpop.permute.xlu0 %963
  %965 = vset.pattern.permute.xlu0 0
  %966 = vperm.xlu0 %965, %v955
  %v967 = vpop.permute.xlu0 %966
  %968 = vset.pattern.permute.xlu0 0
  %969 = vperm.xlu0 %968, %v956
  %v970 = vpop.permute.xlu0 %969
  %971 = vset.pattern.permute.xlu0 0
  %972 = vperm.xlu0 %971, %v957
  %v973 = vpop.permute.xlu0 %972
  %974 = vset.pattern.permute.xlu0 0
  %975 = vperm.xlu0 %974, %v958
  %v976 = vpop.permute.xlu0 %975
  %977 = vset.pattern.permute.xlu0 0
  %978 = vperm.xlu0 %977, %v959
  %v979 = vpop.permute.xlu0 %978
  %980 = vset.pattern.permute.xlu0 0
  %981 = vperm.xlu0 %980, %v960
  %v982 = vpop.permute.xlu0 %981
  %983 = vset.pattern.permute.xlu0 0
  %984 = vperm.xlu0 %983, %v961
  %v985 = vpop.permute.xlu0 %984
  %vm986 = vcmp.eq.s32.totalorder %v118, %v964
  %vm987 = vcmp.eq.s32.totalorder %v119, %v964
  %vm988 = vcmp.eq.s32.totalorder %v120, %v964
  %vm989 = vcmp.eq.s32.totalorder %v121, %v964
  %vm990 = vcmp.eq.s32.totalorder %v122, %v964
  %vm991 = vcmp.eq.s32.totalorder %v123, %v964
  %vm992 = vcmp.eq.s32.totalorder %v118, %v967
  %vm993 = vcmp.eq.s32.totalorder %v119, %v967
  %vm994 = vcmp.eq.s32.totalorder %v120, %v967
  %vm995 = vcmp.eq.s32.totalorder %v121, %v967
  %vm996 = vcmp.eq.s32.totalorder %v122, %v967
  %vm997 = vcmp.eq.s32.totalorder %v123, %v967
  %vm998 = vcmp.eq.s32.totalorder %v118, %v970
  %vm999 = vcmp.eq.s32.totalorder %v119, %v970
  %vm1000 = vcmp.eq.s32.totalorder %v120, %v970
  %vm1001 = vcmp.eq.s32.totalorder %v121, %v970
  %vm1002 = vcmp.eq.s32.totalorder %v122, %v970
  %vm1003 = vcmp.eq.s32.totalorder %v123, %v970
  %vm1004 = vcmp.eq.s32.totalorder %v118, %v973
  %vm1005 = vcmp.eq.s32.totalorder %v119, %v973
  %vm1006 = vcmp.eq.s32.totalorder %v120, %v973
  %vm1007 = vcmp.eq.s32.totalorder %v121, %v973
  %vm1008 = vcmp.eq.s32.totalorder %v122, %v973
  %vm1009 = vcmp.eq.s32.totalorder %v123, %v973
  %vm1010 = vcmp.eq.s32.totalorder %v118, %v976
  %vm1011 = vcmp.eq.s32.totalorder %v119, %v976
  %vm1012 = vcmp.eq.s32.totalorder %v120, %v976
  %vm1013 = vcmp.eq.s32.totalorder %v121, %v976
  %vm1014 = vcmp.eq.s32.totalorder %v122, %v976
  %vm1015 = vcmp.eq.s32.totalorder %v123, %v976
  %vm1016 = vcmp.eq.s32.totalorder %v118, %v979
  %vm1017 = vcmp.eq.s32.totalorder %v119, %v979
  %vm1018 = vcmp.eq.s32.totalorder %v120, %v979
  %vm1019 = vcmp.eq.s32.totalorder %v121, %v979
  %vm1020 = vcmp.eq.s32.totalorder %v122, %v979
  %vm1021 = vcmp.eq.s32.totalorder %v123, %v979
  %vm1022 = vcmp.eq.s32.totalorder %v118, %v982
  %vm1023 = vcmp.eq.s32.totalorder %v119, %v982
  %vm1024 = vcmp.eq.s32.totalorder %v120, %v982
  %vm1025 = vcmp.eq.s32.totalorder %v121, %v982
  %vm1026 = vcmp.eq.s32.totalorder %v122, %v982
  %vm1027 = vcmp.eq.s32.totalorder %v123, %v982
  %vm1028 = vcmp.eq.s32.totalorder %v118, %v985
  %vm1029 = vcmp.eq.s32.totalorder %v119, %v985
  %vm1030 = vcmp.eq.s32.totalorder %v120, %v985
  %vm1031 = vcmp.eq.s32.totalorder %v121, %v985
  %vm1032 = vcmp.eq.s32.totalorder %v122, %v985
  %vm1033 = vcmp.eq.s32.totalorder %v123, %v985
  %v1034 = vsel %vm986, 1, 0
  %v1035 = vsel %vm987, 1, 0
  %v1036 = vsel %vm988, 1, 0
  %v1037 = vsel %vm989, 1, 0
  %v1038 = vsel %vm990, 1, 0
  %v1039 = vsel %vm991, 1, 0
  %v1040 = vsel %vm992, 1, 0
  %v1041 = vsel %vm993, 1, 0
  %v1042 = vsel %vm994, 1, 0
  %v1043 = vsel %vm995, 1, 0
  %v1044 = vsel %vm996, 1, 0
  %v1045 = vsel %vm997, 1, 0
  %v1046 = vsel %vm998, 1, 0
  %v1047 = vsel %vm999, 1, 0
  %v1048 = vsel %vm1000, 1, 0
  %v1049 = vsel %vm1001, 1, 0
  %v1050 = vsel %vm1002, 1, 0
  %v1051 = vsel %vm1003, 1, 0
  %v1052 = vsel %vm1004, 1, 0
  %v1053 = vsel %vm1005, 1, 0
  %v1054 = vsel %vm1006, 1, 0
  %v1055 = vsel %vm1007, 1, 0
  %v1056 = vsel %vm1008, 1, 0
  %v1057 = vsel %vm1009, 1, 0
  %v1058 = vsel %vm1010, 1, 0
  %v1059 = vsel %vm1011, 1, 0
  %v1060 = vsel %vm1012, 1, 0
  %v1061 = vsel %vm1013, 1, 0
  %v1062 = vsel %vm1014, 1, 0
  %v1063 = vsel %vm1015, 1, 0
  %v1064 = vsel %vm1016, 1, 0
  %v1065 = vsel %vm1017, 1, 0
  %v1066 = vsel %vm1018, 1, 0
  %v1067 = vsel %vm1019, 1, 0
  %v1068 = vsel %vm1020, 1, 0
  %v1069 = vsel %vm1021, 1, 0
  %v1070 = vsel %vm1022, 1, 0
  %v1071 = vsel %vm1023, 1, 0
  %v1072 = vsel %vm1024, 1, 0
  %v1073 = vsel %vm1025, 1, 0
  %v1074 = vsel %vm1026, 1, 0
  %v1075 = vsel %vm1027, 1, 0
  %v1076 = vsel %vm1028, 1, 0
  %v1077 = vsel %vm1029, 1, 0
  %v1078 = vsel %vm1030, 1, 0
  %v1079 = vsel %vm1031, 1, 0
  %v1080 = vsel %vm1032, 1, 0
  %v1081 = vsel %vm1033, 1, 0
  %v1082 = vcvt.s32.f32 %v1034
  %v1083 = vcvt.s32.f32 %v1035
  %v1084 = vcvt.s32.f32 %v1036
  %v1085 = vcvt.s32.f32 %v1037
  %v1086 = vcvt.s32.f32 %v1038
  %v1087 = vcvt.s32.f32 %v1039
  %v1088 = vcvt.s32.f32 %v1040
  %v1089 = vcvt.s32.f32 %v1041
  %v1090 = vcvt.s32.f32 %v1042
  %v1091 = vcvt.s32.f32 %v1043
  %v1092 = vcvt.s32.f32 %v1044
  %v1093 = vcvt.s32.f32 %v1045
  %v1094 = vcvt.s32.f32 %v1046
  %v1095 = vcvt.s32.f32 %v1047
  %v1096 = vcvt.s32.f32 %v1048
  %v1097 = vcvt.s32.f32 %v1049
  %v1098 = vcvt.s32.f32 %v1050
  %v1099 = vcvt.s32.f32 %v1051
  %v1100 = vcvt.s32.f32 %v1052
  %v1101 = vcvt.s32.f32 %v1053
  %v1102 = vcvt.s32.f32 %v1054
  %v1103 = vcvt.s32.f32 %v1055
  %v1104 = vcvt.s32.f32 %v1056
  %v1105 = vcvt.s32.f32 %v1057
  %v1106 = vcvt.s32.f32 %v1058
  %v1107 = vcvt.s32.f32 %v1059
  %v1108 = vcvt.s32.f32 %v1060
  %v1109 = vcvt.s32.f32 %v1061
  %v1110 = vcvt.s32.f32 %v1062
  %v1111 = vcvt.s32.f32 %v1063
  %v1112 = vcvt.s32.f32 %v1064
  %v1113 = vcvt.s32.f32 %v1065
  %v1114 = vcvt.s32.f32 %v1066
  %v1115 = vcvt.s32.f32 %v1067
  %v1116 = vcvt.s32.f32 %v1068
  %v1117 = vcvt.s32.f32 %v1069
  %v1118 = vcvt.s32.f32 %v1070
  %v1119 = vcvt.s32.f32 %v1071
  %v1120 = vcvt.s32.f32 %v1072
  %v1121 = vcvt.s32.f32 %v1073
  %v1122 = vcvt.s32.f32 %v1074
  %v1123 = vcvt.s32.f32 %v1075
  %v1124 = vcvt.s32.f32 %v1076
  %v1125 = vcvt.s32.f32 %v1077
  %v1126 = vcvt.s32.f32 %v1078
  %v1127 = vcvt.s32.f32 %v1079
  %v1128 = vcvt.s32.f32 %v1080
  %v1129 = vcvt.s32.f32 %v1081
  %1130 = vmatprep.subr.mxu0 0.0
  %1131 = vmatpush1.msra.mxu0 %v32
  %1132 = vmatprep.subr.mxu0 0.0
  %1133 = vmatpush1.msra.mxu0 %v31
  %1134 = vmatprep.subr.mxu0 0.0
  %1135 = vmatpush1.msra.mxu0 %v30
  %1136 = vmatprep.subr.mxu0 0.0
  %1137 = vmatpush1.msra.mxu0 %v29
  %1138 = vmatprep.subr.mxu0 0.0
  %1139 = vmatpush1.msra.mxu0 %v28
  %1140 = vmatprep.subr.mxu0 0.0
  %1141 = vmatpush1.msra.mxu0 %v27
  %1142 = vmatprep.subr.mxu0 0.0
  %1143 = vmatpush1.msra.mxu0 %v26
  %1144 = vmatprep.subr.mxu0 0.0
  %1145 = vmatpush1.msra.mxu0 %v25
  %1146 = vmatprep.subr.mxu0 0.0
  %1147 = vmatpush1.msra.mxu0 %v24
  %1148 = vmatprep.subr.mxu0 0.0
  %1149 = vmatpush1.msra.mxu0 %v23
  %1150 = vmatprep.subr.mxu0 0.0
  %1151 = vmatpush1.msra.mxu0 %v22
  %1152 = vmatprep.subr.mxu0 0.0
  %1153 = vmatpush1.msra.mxu0 %v21
  %1154 = vmatprep.subr.mxu0 0.0
  %1155 = vmatpush1.msra.mxu0 %v20
  %1156 = vmatprep.subr.mxu0 0.0
  %1157 = vmatpush1.msra.mxu0 %v19
  %1158 = vmatprep.subr.mxu0 0.0
  %1159 = vmatpush1.msra.mxu0 %v18
  %1160 = vmatprep.subr.mxu0 0.0
  %1161 = vmatpush1.msra.mxu0 %v17
  %1162 = vmatprep.subr.mxu0 0.0
  %1163 = vmatpush2.msra.mxu0 %v48
  %1164 = vmatprep.subr.mxu0 0.0
  %1165 = vmatpush2.msra.mxu0 %v47
  %1166 = vmatprep.subr.mxu0 0.0
  %1167 = vmatpush2.msra.mxu0 %v46
  %1168 = vmatprep.subr.mxu0 0.0
  %1169 = vmatpush2.msra.mxu0 %v45
  %1170 = vmatprep.subr.mxu0 0.0
  %1171 = vmatpush2.msra.mxu0 %v44
  %1172 = vmatprep.subr.mxu0 0.0
  %1173 = vmatpush2.msra.mxu0 %v43
  %1174 = vmatprep.subr.mxu0 0.0
  %1175 = vmatpush2.msra.mxu0 %v42
  %1176 = vmatprep.subr.mxu0 0.0
  %1177 = vmatpush2.msra.mxu0 %v41
  %1178 = vmatprep.subr.mxu0 0.0
  %1179 = vmatpush2.msra.mxu0 %v40
  %1180 = vmatprep.subr.mxu0 0.0
  %1181 = vmatpush2.msra.mxu0 %v39
  %1182 = vmatprep.subr.mxu0 0.0
  %1183 = vmatpush2.msra.mxu0 %v38
  %1184 = vmatprep.subr.mxu0 0.0
  %1185 = vmatpush2.msra.mxu0 %v37
  %1186 = vmatprep.subr.mxu0 0.0
  %1187 = vmatpush2.msra.mxu0 %v36
  %1188 = vmatprep.subr.mxu0 0.0
  %1189 = vmatpush2.msra.mxu0 %v35
  %1190 = vmatprep.subr.mxu0 0.0
  %1191 = vmatpush2.msra.mxu0 %v34
  %1192 = vmatprep.subr.mxu0 0.0
  %1193 = vmatpush2.msra.mxu0 %v33
  %1194 = vmatprep.mubr.f32.mxu0 %v1083
  %1195 = vmatmul.mubr.f32.gmra.mxu0 %v1082
  %v1196 = vpop.f32.mrf.mxu0
  %v1197 = vadd.f32 0.0, %v1196
  %v1198 = vpop.f32.mrf.mxu0
  %1199 = vmatprep.mubr.f32.mxu0 %v1089
  %1200 = vmatmul.mubr.f32.gmra.mxu0 %v1088
  %v1201 = vpop.f32.mrf.mxu0
  %v1202 = vadd.f32 0.0, %v1201
  %v1203 = vpop.f32.mrf.mxu0
  %1204 = vmatprep.mubr.f32.mxu0 %v1095
  %1205 = vmatmul.mubr.f32.gmra.mxu0 %v1094
  %v1206 = vpop.f32.mrf.mxu0
  %v1207 = vadd.f32 0.0, %v1206
  %v1208 = vpop.f32.mrf.mxu0
  %1209 = vmatprep.mubr.f32.mxu0 %v1101
  %1210 = vmatmul.mubr.f32.gmra.mxu0 %v1100
  %v1211 = vpop.f32.mrf.mxu0
  %v1212 = vadd.f32 0.0, %v1211
  %v1213 = vpop.f32.mrf.mxu0
  %1214 = vmatprep.mubr.f32.mxu0 %v1107
  %1215 = vmatmul.mubr.f32.gmra.mxu0 %v1106
  %v1216 = vpop.f32.mrf.mxu0
  %v1217 = vadd.f32 0.0, %v1216
  %v1218 = vpop.f32.mrf.mxu0
  %1219 = vmatprep.mubr.f32.mxu0 %v1113
  %1220 = vmatmul.mubr.f32.gmra.mxu0 %v1112
  %v1221 = vpop.f32.mrf.mxu0
  %v1222 = vadd.f32 0.0, %v1221
  %v1223 = vpop.f32.mrf.mxu0
  %1224 = vmatprep.mubr.f32.mxu0 %v1119
  %1225 = vmatmul.mubr.f32.gmra.mxu0 %v1118
  %v1226 = vpop.f32.mrf.mxu0
  %v1227 = vadd.f32 0.0, %v1226
  %v1228 = vpop.f32.mrf.mxu0
  %1229 = vmatprep.mubr.f32.mxu0 %v1125
  %1230 = vmatmul.mubr.f32.gmra.mxu0 %v1124
  %v1231 = vpop.f32.mrf.mxu0
  %v1232 = vadd.f32 0.0, %v1231
  %v1233 = vpop.f32.mrf.mxu0
  %1234 = vdwg.mxu0
  %1235 = vmatprep.subr.mxu0 0.0
  %1236 = vmatpush1.msra.mxu0 %v64
  %1237 = vmatprep.subr.mxu0 0.0
  %1238 = vmatpush1.msra.mxu0 %v63
  %1239 = vmatprep.subr.mxu0 0.0
  %1240 = vmatpush1.msra.mxu0 %v62
  %1241 = vmatprep.subr.mxu0 0.0
  %1242 = vmatpush1.msra.mxu0 %v61
  %1243 = vmatprep.subr.mxu0 0.0
  %1244 = vmatpush1.msra.mxu0 %v60
  %1245 = vmatprep.subr.mxu0 0.0
  %1246 = vmatpush1.msra.mxu0 %v59
  %1247 = vmatprep.subr.mxu0 0.0
  %1248 = vmatpush1.msra.mxu0 %v58
  %1249 = vmatprep.subr.mxu0 0.0
  %1250 = vmatpush1.msra.mxu0 %v57
  %1251 = vmatprep.subr.mxu0 0.0
  %1252 = vmatpush1.msra.mxu0 %v56
  %1253 = vmatprep.subr.mxu0 0.0
  %1254 = vmatpush1.msra.mxu0 %v55
  %1255 = vmatprep.subr.mxu0 0.0
  %1256 = vmatpush1.msra.mxu0 %v54
  %1257 = vmatprep.subr.mxu0 0.0
  %1258 = vmatpush1.msra.mxu0 %v53
  %1259 = vmatprep.subr.mxu0 0.0
  %1260 = vmatpush1.msra.mxu0 %v52
  %1261 = vmatprep.subr.mxu0 0.0
  %1262 = vmatpush1.msra.mxu0 %v51
  %1263 = vmatprep.subr.mxu0 0.0
  %1264 = vmatpush1.msra.mxu0 %v50
  %1265 = vmatprep.subr.mxu0 0.0
  %1266 = vmatpush1.msra.mxu0 %v49
  %1267 = vmatprep.subr.mxu0 0.0
  %1268 = vmatpush2.msra.mxu0 %v80
  %1269 = vmatprep.subr.mxu0 0.0
  %1270 = vmatpush2.msra.mxu0 %v79
  %1271 = vmatprep.subr.mxu0 0.0
  %1272 = vmatpush2.msra.mxu0 %v78
  %1273 = vmatprep.subr.mxu0 0.0
  %1274 = vmatpush2.msra.mxu0 %v77
  %1275 = vmatprep.subr.mxu0 0.0
  %1276 = vmatpush2.msra.mxu0 %v76
  %1277 = vmatprep.subr.mxu0 0.0
  %1278 = vmatpush2.msra.mxu0 %v75
  %1279 = vmatprep.subr.mxu0 0.0
  %1280 = vmatpush2.msra.mxu0 %v74
  %1281 = vmatprep.subr.mxu0 0.0
  %1282 = vmatpush2.msra.mxu0 %v73
  %1283 = vmatprep.subr.mxu0 0.0
  %1284 = vmatpush2.msra.mxu0 %v72
  %1285 = vmatprep.subr.mxu0 0.0
  %1286 = vmatpush2.msra.mxu0 %v71
  %1287 = vmatprep.subr.mxu0 0.0
  %1288 = vmatpush2.msra.mxu0 %v70
  %1289 = vmatprep.subr.mxu0 0.0
  %1290 = vmatpush2.msra.mxu0 %v69
  %1291 = vmatprep.subr.mxu0 0.0
  %1292 = vmatpush2.msra.mxu0 %v68
  %1293 = vmatprep.subr.mxu0 0.0
  %1294 = vmatpush2.msra.mxu0 %v67
  %1295 = vmatprep.subr.mxu0 0.0
  %1296 = vmatpush2.msra.mxu0 %v66
  %1297 = vmatprep.subr.mxu0 0.0
  %1298 = vmatpush2.msra.mxu0 %v65
  %1299 = vmatprep.mubr.f32.mxu0 %v1085
  %1300 = vmatmul.mubr.f32.gmra.mxu0 %v1084
  %v1301 = vpop.f32.mrf.mxu0
  %v1302 = vadd.f32 %v1197, %v1301
  %v1303 = vpop.f32.mrf.mxu0
  %1304 = vmatprep.mubr.f32.mxu0 %v1091
  %1305 = vmatmul.mubr.f32.gmra.mxu0 %v1090
  %v1306 = vpop.f32.mrf.mxu0
  %v1307 = vadd.f32 %v1202, %v1306
  %v1308 = vpop.f32.mrf.mxu0
  %1309 = vmatprep.mubr.f32.mxu0 %v1097
  %1310 = vmatmul.mubr.f32.gmra.mxu0 %v1096
  %v1311 = vpop.f32.mrf.mxu0
  %v1312 = vadd.f32 %v1207, %v1311
  %v1313 = vpop.f32.mrf.mxu0
  %1314 = vmatprep.mubr.f32.mxu0 %v1103
  %1315 = vmatmul.mubr.f32.gmra.mxu0 %v1102
  %v1316 = vpop.f32.mrf.mxu0
  %v1317 = vadd.f32 %v1212, %v1316
  %v1318 = vpop.f32.mrf.mxu0
  %1319 = vmatprep.mubr.f32.mxu0 %v1109
  %1320 = vmatmul.mubr.f32.gmra.mxu0 %v1108
  %v1321 = vpop.f32.mrf.mxu0
  %v1322 = vadd.f32 %v1217, %v1321
  %v1323 = vpop.f32.mrf.mxu0
  %1324 = vmatprep.mubr.f32.mxu0 %v1115
  %1325 = vmatmul.mubr.f32.gmra.mxu0 %v1114
  %v1326 = vpop.f32.mrf.mxu0
  %v1327 = vadd.f32 %v1222, %v1326
  %v1328 = vpop.f32.mrf.mxu0
  %1329 = vmatprep.mubr.f32.mxu0 %v1121
  %1330 = vmatmul.mubr.f32.gmra.mxu0 %v1120
  %v1331 = vpop.f32.mrf.mxu0
  %v1332 = vadd.f32 %v1227, %v1331
  %v1333 = vpop.f32.mrf.mxu0
  %1334 = vmatprep.mubr.f32.mxu0 %v1127
  %1335 = vmatmul.mubr.f32.gmra.mxu0 %v1126
  %v1336 = vpop.f32.mrf.mxu0
  %v1337 = vadd.f32 %v1232, %v1336
  %v1338 = vpop.f32.mrf.mxu0
  %1339 = vdwg.mxu0
  %1340 = vmatprep.subr.mxu0 0.0
  %1341 = vmatpush1.msra.mxu0 %v96
  %1342 = vmatprep.subr.mxu0 0.0
  %1343 = vmatpush1.msra.mxu0 %v95
  %1344 = vmatprep.subr.mxu0 0.0
  %1345 = vmatpush1.msra.mxu0 %v94
  %1346 = vmatprep.subr.mxu0 0.0
  %1347 = vmatpush1.msra.mxu0 %v93
  %1348 = vmatprep.subr.mxu0 0.0
  %1349 = vmatpush1.msra.mxu0 %v92
  %1350 = vmatprep.subr.mxu0 0.0
  %1351 = vmatpush1.msra.mxu0 %v91
  %1352 = vmatprep.subr.mxu0 0.0
  %1353 = vmatpush1.msra.mxu0 %v90
  %1354 = vmatprep.subr.mxu0 0.0
  %1355 = vmatpush1.msra.mxu0 %v89
  %1356 = vmatprep.subr.mxu0 0.0
  %1357 = vmatpush1.msra.mxu0 %v88
  %1358 = vmatprep.subr.mxu0 0.0
  %1359 = vmatpush1.msra.mxu0 %v87
  %1360 = vmatprep.subr.mxu0 0.0
  %1361 = vmatpush1.msra.mxu0 %v86
  %1362 = vmatprep.subr.mxu0 0.0
  %1363 = vmatpush1.msra.mxu0 %v85
  %1364 = vmatprep.subr.mxu0 0.0
  %1365 = vmatpush1.msra.mxu0 %v84
  %1366 = vmatprep.subr.mxu0 0.0
  %1367 = vmatpush1.msra.mxu0 %v83
  %1368 = vmatprep.subr.mxu0 0.0
  %1369 = vmatpush1.msra.mxu0 %v82
  %1370 = vmatprep.subr.mxu0 0.0
  %1371 = vmatpush1.msra.mxu0 %v81
  %1372 = vmatprep.subr.mxu0 0.0
  %1373 = vmatpush2.msra.mxu0 %v112
  %1374 = vmatprep.subr.mxu0 0.0
  %1375 = vmatpush2.msra.mxu0 %v111
  %1376 = vmatprep.subr.mxu0 0.0
  %1377 = vmatpush2.msra.mxu0 %v110
  %1378 = vmatprep.subr.mxu0 0.0
  %1379 = vmatpush2.msra.mxu0 %v109
  %1380 = vmatprep.subr.mxu0 0.0
  %1381 = vmatpush2.msra.mxu0 %v108
  %1382 = vmatprep.subr.mxu0 0.0
  %1383 = vmatpush2.msra.mxu0 %v107
  %1384 = vmatprep.subr.mxu0 0.0
  %1385 = vmatpush2.msra.mxu0 %v106
  %1386 = vmatprep.subr.mxu0 0.0
  %1387 = vmatpush2.msra.mxu0 %v105
  %1388 = vmatprep.subr.mxu0 0.0
  %1389 = vmatpush2.msra.mxu0 %v104
  %1390 = vmatprep.subr.mxu0 0.0
  %1391 = vmatpush2.msra.mxu0 %v103
  %1392 = vmatprep.subr.mxu0 0.0
  %1393 = vmatpush2.msra.mxu0 %v102
  %1394 = vmatprep.subr.mxu0 0.0
  %1395 = vmatpush2.msra.mxu0 %v101
  %1396 = vmatprep.subr.mxu0 0.0
  %1397 = vmatpush2.msra.mxu0 %v100
  %1398 = vmatprep.subr.mxu0 0.0
  %1399 = vmatpush2.msra.mxu0 %v99
  %1400 = vmatprep.subr.mxu0 0.0
  %1401 = vmatpush2.msra.mxu0 %v98
  %1402 = vmatprep.subr.mxu0 0.0
  %1403 = vmatpush2.msra.mxu0 %v97
  %1404 = vmatprep.mubr.f32.mxu0 %v1087
  %1405 = vmatmul.mubr.f32.gmra.mxu0 %v1086
  %v1406 = vpop.f32.mrf.mxu0
  %v1407 = vadd.f32 %v1302, %v1406
  %v1408 = vpop.f32.mrf.mxu0
  %1409 = vmatprep.mubr.f32.mxu0 %v1093
  %1410 = vmatmul.mubr.f32.gmra.mxu0 %v1092
  %v1411 = vpop.f32.mrf.mxu0
  %v1412 = vadd.f32 %v1307, %v1411
  %v1413 = vpop.f32.mrf.mxu0
  %1414 = vmatprep.mubr.f32.mxu0 %v1099
  %1415 = vmatmul.mubr.f32.gmra.mxu0 %v1098
  %v1416 = vpop.f32.mrf.mxu0
  %v1417 = vadd.f32 %v1312, %v1416
  %v1418 = vpop.f32.mrf.mxu0
  %1419 = vmatprep.mubr.f32.mxu0 %v1105
  %1420 = vmatmul.mubr.f32.gmra.mxu0 %v1104
  %v1421 = vpop.f32.mrf.mxu0
  %v1422 = vadd.f32 %v1317, %v1421
  %v1423 = vpop.f32.mrf.mxu0
  %1424 = vmatprep.mubr.f32.mxu0 %v1111
  %1425 = vmatmul.mubr.f32.gmra.mxu0 %v1110
  %v1426 = vpop.f32.mrf.mxu0
  %v1427 = vadd.f32 %v1322, %v1426
  %v1428 = vpop.f32.mrf.mxu0
  %1429 = vmatprep.mubr.f32.mxu0 %v1117
  %1430 = vmatmul.mubr.f32.gmra.mxu0 %v1116
  %v1431 = vpop.f32.mrf.mxu0
  %v1432 = vadd.f32 %v1327, %v1431
  %v1433 = vpop.f32.mrf.mxu0
  %1434 = vmatprep.mubr.f32.mxu0 %v1123
  %1435 = vmatmul.mubr.f32.gmra.mxu0 %v1122
  %v1436 = vpop.f32.mrf.mxu0
  %v1437 = vadd.f32 %v1332, %v1436
  %v1438 = vpop.f32.mrf.mxu0
  %1439 = vmatprep.mubr.f32.mxu0 %v1129
  %1440 = vmatmul.mubr.f32.gmra.mxu0 %v1128
  %v1441 = vpop.f32.mrf.mxu0
  %v1442 = vadd.f32 %v1337, %v1441
  %v1443 = vpop.f32.mrf.mxu0
  %1444 = vdwg.mxu0
  %v1445 = vlaneseq
  %v1446 = vshrl.u32 %v1445, 7
  %v1447 = vadd.s32 %v1446, 8
  %vm1448 = vcmp.ge.s32.totalorder %v1446, 5
  %vm1449 = vcmp.ge.s32.totalorder %v1447, 5
  %1454 = vrot.lane.b32.xlu0 %v916, 96
  %v1455 = vpop.permute.xlu0 %1454
  %1456 = vrot.lane.b32.xlu0 %v921, 96
  %v1457 = vpop.permute.xlu0 %1456
  %1458 = vrot.lane.b32.xlu0 %v926, 96
  %v1459 = vpop.permute.xlu0 %1458
  %1460 = vrot.lane.b32.xlu0 %v931, 96
  %v1461 = vpop.permute.xlu0 %1460
  %vm1466 = vcmask 261120
  %v1468 = vsel %vm1466, %v445, 0
  %v1471 = vsel %vm1466, %v450, 0
  %1473 = vmatprep.subr.mxu0 0.0
  %1474 = vmatpush1.msra.mxu0 0.0
  %1475 = vmatprep.subr.mxu0 0.0
  %1476 = vmatpush1.msra.mxu0 0.0
  %1477 = vmatprep.subr.mxu0 0.0
  %1478 = vmatpush1.msra.mxu0 0.0
  %1479 = vmatprep.subr.mxu0 0.0
  %1480 = vmatpush1.msra.mxu0 0.0
  %1481 = vmatprep.subr.mxu0 0.0
  %1482 = vmatpush1.msra.mxu0 0.0
  %1483 = vmatprep.subr.mxu0 0.0
  %1484 = vmatpush1.msra.mxu0 0.0
  %1485 = vmatprep.subr.mxu0 0.0
  %1486 = vmatpush1.msra.mxu0 0.0
  %1487 = vmatprep.subr.mxu0 0.0
  %1488 = vmatpush1.msra.mxu0 0.0
  %1489 = vmatprep.subr.mxu0 0.0
  %1490 = vmatpush1.msra.mxu0 0.0
  %1491 = vmatprep.subr.mxu0 0.0
  %1492 = vmatpush1.msra.mxu0 0.0
  %1493 = vmatprep.subr.mxu0 0.0
  %1494 = vmatpush1.msra.mxu0 0.0
  %1495 = vmatprep.subr.mxu0 0.0
  %1496 = vmatpush1.msra.mxu0 0.0
  %1497 = vmatprep.subr.mxu0 0.0
  %1498 = vmatpush1.msra.mxu0 %v1461
  %1499 = vmatprep.subr.mxu0 0.0
  %1500 = vmatpush1.msra.mxu0 %v1459
  %1501 = vmatprep.subr.mxu0 0.0
  %1502 = vmatpush1.msra.mxu0 %v1457
  %1503 = vmatprep.subr.mxu0 0.0
  %1504 = vmatpush1.msra.mxu0 %v1455
  %1505 = vmatprep.subr.mxu0 0.0
  %1506 = vmatpush2.msra.mxu0 0.0
  %1507 = vmatprep.subr.mxu0 0.0
  %1508 = vmatpush2.msra.mxu0 0.0
  %1509 = vmatprep.subr.mxu0 0.0
  %1510 = vmatpush2.msra.mxu0 0.0
  %1511 = vmatprep.subr.mxu0 0.0
  %1512 = vmatpush2.msra.mxu0 0.0
  %1513 = vmatprep.subr.mxu0 0.0
  %1514 = vmatpush2.msra.mxu0 0.0
  %1515 = vmatprep.subr.mxu0 0.0
  %1516 = vmatpush2.msra.mxu0 0.0
  %1517 = vmatprep.subr.mxu0 0.0
  %1518 = vmatpush2.msra.mxu0 0.0
  %1519 = vmatprep.subr.mxu0 0.0
  %1520 = vmatpush2.msra.mxu0 0.0
  %1521 = vmatprep.subr.mxu0 0.0
  %1522 = vmatpush2.msra.mxu0 0.0
  %1523 = vmatprep.subr.mxu0 0.0
  %1524 = vmatpush2.msra.mxu0 0.0
  %1525 = vmatprep.subr.mxu0 0.0
  %1526 = vmatpush2.msra.mxu0 0.0
  %1527 = vmatprep.subr.mxu0 0.0
  %1528 = vmatpush2.msra.mxu0 0.0
  %1529 = vmatprep.subr.mxu0 0.0
  %1530 = vmatpush2.msra.mxu0 0.0
  %1531 = vmatprep.subr.mxu0 0.0
  %1532 = vmatpush2.msra.mxu0 0.0
  %1533 = vmatprep.subr.mxu0 0.0
  %1534 = vmatpush2.msra.mxu0 0.0
  %1535 = vmatprep.subr.mxu0 0.0
  %1536 = vmatpush2.msra.mxu0 0.0
  %1537 = vmatprep.mubr.f32.mxu0 0.0
  %1538 = vmatmul.mubr.f32.gmra.mxu0 %v1468
  %v1539 = vpop.f32.mrf.mxu0
  %v1540 = vadd.f32 0.0, %v1539
  %v1541 = vpop.f32.mrf.mxu0
  %1542 = vmatprep.mubr.f32.mxu0 0.0
  %1543 = vmatmul.mubr.f32.gmra.mxu0 %v1471
  %v1544 = vpop.f32.mrf.mxu0
  %v1545 = vadd.f32 0.0, %v1544
  %v1546 = vpop.f32.mrf.mxu0
  %1547 = vdwg.mxu0
  %v1548 = vmul.f32 %v1540, 0.05303301
  %v1549 = vmul.f32 %v1545, 0.05303301
  %v1550 = vsel %vm1466, %v1548, -inf
  %1551 = vmax.xlane.f32.xlu0 %v1550
  %v1552 = vpop.xlane.xlu0 %1551
  %v1553 = vsel %vm1466, %v1549, -inf
  %1554 = vmax.xlane.f32.xlu0 %v1553
  %v1555 = vpop.xlane.xlu0 %1554
  %v1556 = vsub.f32 %v1548, %v1552
  %v1557 = vsub.f32 %v1549, %v1555
  %v1558 = vmul.f32 %v1556, 1.442695
  %v1559 = vpow.pop %v1558
  %v1560 = vmul.f32 %v1557, 1.442695
  %v1561 = vpow.pop %v1560
  %v1562 = vsel %vm1466, %v1559, 0.0
  %1563 = vadd.xlane.f32.xlu0 %v1562
  %v1564 = vpop.xlane.xlu0 %1563
  %v1565 = vsel %vm1466, %v1561, 0.0
  %1566 = vadd.xlane.f32.xlu0 %v1565
  %v1567 = vpop.xlane.xlu0 %1566
  %v1568 = vrcp.pop %v1564
  %v1569 = vmul.f32 %v1559, %v1568
  %v1570 = vrcp.pop %v1567
  %v1571 = vmul.f32 %v1561, %v1570
  %1576 = vrot.lane.b32.xlu0 %v1407, 64
  %v1577 = vpop.permute.xlu0 %1576
  %1578 = vrot.lane.b32.xlu0 %v1412, 64
  %v1579 = vpop.permute.xlu0 %1578
  %1580 = vrot.lane.b32.xlu0 %v1417, 64
  %v1581 = vpop.permute.xlu0 %1580
  %1582 = vrot.lane.b32.xlu0 %v1422, 64
  %v1583 = vpop.permute.xlu0 %1582
  %v1589 = vsel %vm1466, %v1569, 0
  %v1592 = vsel %vm1466, %v1571, 0
  %1594 = vmatprep.subr.mxu0 0.0
  %1595 = vmatpush1.msra.mxu0 0.0
  %1596 = vmatprep.subr.mxu0 0.0
  %1597 = vmatpush1.msra.mxu0 0.0
  %1598 = vmatprep.subr.mxu0 0.0
  %1599 = vmatpush1.msra.mxu0 0.0
  %1600 = vmatprep.subr.mxu0 0.0
  %1601 = vmatpush1.msra.mxu0 0.0
  %1602 = vmatprep.subr.mxu0 0.0
  %1603 = vmatpush1.msra.mxu0 0.0
  %1604 = vmatprep.subr.mxu0 0.0
  %1605 = vmatpush1.msra.mxu0 0.0
  %1606 = vmatprep.subr.mxu0 0.0
  %1607 = vmatpush1.msra.mxu0 0.0
  %1608 = vmatprep.subr.mxu0 0.0
  %1609 = vmatpush1.msra.mxu0 0.0
  %1610 = vmatprep.subr.mxu0 0.0
  %1611 = vmatpush1.msra.mxu0 0.0
  %1612 = vmatprep.subr.mxu0 0.0
  %1613 = vmatpush1.msra.mxu0 0.0
  %1614 = vmatprep.subr.mxu0 0.0
  %1615 = vmatpush1.msra.mxu0 0.0
  %1616 = vmatprep.subr.mxu0 0.0
  %1617 = vmatpush1.msra.mxu0 0.0
  %1618 = vmatprep.subr.mxu0 0.0
  %1619 = vmatpush1.msra.mxu0 %v1583
  %1620 = vmatprep.subr.mxu0 0.0
  %1621 = vmatpush1.msra.mxu0 %v1581
  %1622 = vmatprep.subr.mxu0 0.0
  %1623 = vmatpush1.msra.mxu0 %v1579
  %1624 = vmatprep.subr.mxu0 0.0
  %1625 = vmatpush1.msra.mxu0 %v1577
  %1626 = vmatprep.subr.mxu0 0.0
  %1627 = vmatpush2.msra.mxu0 0.0
  %1628 = vmatprep.subr.mxu0 0.0
  %1629 = vmatpush2.msra.mxu0 0.0
  %1630 = vmatprep.subr.mxu0 0.0
  %1631 = vmatpush2.msra.mxu0 0.0
  %1632 = vmatprep.subr.mxu0 0.0
  %1633 = vmatpush2.msra.mxu0 0.0
  %1634 = vmatprep.subr.mxu0 0.0
  %1635 = vmatpush2.msra.mxu0 0.0
  %1636 = vmatprep.subr.mxu0 0.0
  %1637 = vmatpush2.msra.mxu0 0.0
  %1638 = vmatprep.subr.mxu0 0.0
  %1639 = vmatpush2.msra.mxu0 0.0
  %1640 = vmatprep.subr.mxu0 0.0
  %1641 = vmatpush2.msra.mxu0 0.0
  %1642 = vmatprep.subr.mxu0 0.0
  %1643 = vmatpush2.msra.mxu0 0.0
  %1644 = vmatprep.subr.mxu0 0.0
  %1645 = vmatpush2.msra.mxu0 0.0
  %1646 = vmatprep.subr.mxu0 0.0
  %1647 = vmatpush2.msra.mxu0 0.0
  %1648 = vmatprep.subr.mxu0 0.0
  %1649 = vmatpush2.msra.mxu0 0.0
  %1650 = vmatprep.subr.mxu0 0.0
  %1651 = vmatpush2.msra.mxu0 0.0
  %1652 = vmatprep.subr.mxu0 0.0
  %1653 = vmatpush2.msra.mxu0 0.0
  %1654 = vmatprep.subr.mxu0 0.0
  %1655 = vmatpush2.msra.mxu0 0.0
  %1656 = vmatprep.subr.mxu0 0.0
  %1657 = vmatpush2.msra.mxu0 0.0
  %1658 = vmatprep.mubr.f32.mxu0 0.0
  %1659 = vmatmul.mubr.f32.gmra.mxu0 %v1589
  %v1660 = vpop.f32.mrf.mxu0
  %v1661 = vadd.f32 0.0, %v1660
  %v1662 = vpop.f32.mrf.mxu0
  %1663 = vmatprep.mubr.f32.mxu0 0.0
  %1664 = vmatmul.mubr.f32.gmra.mxu0 %v1592
  %v1665 = vpop.f32.mrf.mxu0
  %v1666 = vadd.f32 0.0, %v1665
  %v1667 = vpop.f32.mrf.mxu0
  %1668 = vdwg.mxu0
  %v1669 = vsel %vm1448, nan, %v1661
  %v1670 = vsel %vm1449, nan, %v1666
  %1675 = vrot.lane.b32.xlu0 %v936, 96
  %v1676 = vpop.permute.xlu0 %1675
  %1677 = vrot.lane.b32.xlu0 %v941, 96
  %v1678 = vpop.permute.xlu0 %1677
  %1679 = vrot.lane.b32.xlu0 %v946, 96
  %v1680 = vpop.permute.xlu0 %1679
  %1681 = vrot.lane.b32.xlu0 %v951, 96
  %v1682 = vpop.permute.xlu0 %1681
  %v1688 = vsel %vm1466, %v455, 0
  %v1691 = vsel %vm1466, %v460, 0
  %1693 = vmatprep.subr.mxu0 0.0
  %1694 = vmatpush1.msra.mxu0 0.0
  %1695 = vmatprep.subr.mxu0 0.0
  %1696 = vmatpush1.msra.mxu0 0.0
  %1697 = vmatprep.subr.mxu0 0.0
  %1698 = vmatpush1.msra.mxu0 0.0
  %1699 = vmatprep.subr.mxu0 0.0
  %1700 = vmatpush1.msra.mxu0 0.0
  %1701 = vmatprep.subr.mxu0 0.0
  %1702 = vmatpush1.msra.mxu0 0.0
  %1703 = vmatprep.subr.mxu0 0.0
  %1704 = vmatpush1.msra.mxu0 0.0
  %1705 = vmatprep.subr.mxu0 0.0
  %1706 = vmatpush1.msra.mxu0 0.0
  %1707 = vmatprep.subr.mxu0 0.0
  %1708 = vmatpush1.msra.mxu0 0.0
  %1709 = vmatprep.subr.mxu0 0.0
  %1710 = vmatpush1.msra.mxu0 0.0
  %1711 = vmatprep.subr.mxu0 0.0
  %1712 = vmatpush1.msra.mxu0 0.0
  %1713 = vmatprep.subr.mxu0 0.0
  %1714 = vmatpush1.msra.mxu0 0.0
  %1715 = vmatprep.subr.mxu0 0.0
  %1716 = vmatpush1.msra.mxu0 0.0
  %1717 = vmatprep.subr.mxu0 0.0
  %1718 = vmatpush1.msra.mxu0 %v1682
  %1719 = vmatprep.subr.mxu0 0.0
  %1720 = vmatpush1.msra.mxu0 %v1680
  %1721 = vmatprep.subr.mxu0 0.0
  %1722 = vmatpush1.msra.mxu0 %v1678
  %1723 = vmatprep.subr.mxu0 0.0
  %1724 = vmatpush1.msra.mxu0 %v1676
  %1725 = vmatprep.subr.mxu0 0.0
  %1726 = vmatpush2.msra.mxu0 0.0
  %1727 = vmatprep.subr.mxu0 0.0
  %1728 = vmatpush2.msra.mxu0 0.0
  %1729 = vmatprep.subr.mxu0 0.0
  %1730 = vmatpush2.msra.mxu0 0.0
  %1731 = vmatprep.subr.mxu0 0.0
  %1732 = vmatpush2.msra.mxu0 0.0
  %1733 = vmatprep.subr.mxu0 0.0
  %1734 = vmatpush2.msra.mxu0 0.0
  %1735 = vmatprep.subr.mxu0 0.0
  %1736 = vmatpush2.msra.mxu0 0.0
  %1737 = vmatprep.subr.mxu0 0.0
  %1738 = vmatpush2.msra.mxu0 0.0
  %1739 = vmatprep.subr.mxu0 0.0
  %1740 = vmatpush2.msra.mxu0 0.0
  %1741 = vmatprep.subr.mxu0 0.0
  %1742 = vmatpush2.msra.mxu0 0.0
  %1743 = vmatprep.subr.mxu0 0.0
  %1744 = vmatpush2.msra.mxu0 0.0
  %1745 = vmatprep.subr.mxu0 0.0
  %1746 = vmatpush2.msra.mxu0 0.0
  %1747 = vmatprep.subr.mxu0 0.0
  %1748 = vmatpush2.msra.mxu0 0.0
  %1749 = vmatprep.subr.mxu0 0.0
  %1750 = vmatpush2.msra.mxu0 0.0
  %1751 = vmatprep.subr.mxu0 0.0
  %1752 = vmatpush2.msra.mxu0 0.0
  %1753 = vmatprep.subr.mxu0 0.0
  %1754 = vmatpush2.msra.mxu0 0.0
  %1755 = vmatprep.subr.mxu0 0.0
  %1756 = vmatpush2.msra.mxu0 0.0
  %1757 = vmatprep.mubr.f32.mxu0 0.0
  %1758 = vmatmul.mubr.f32.gmra.mxu0 %v1688
  %v1759 = vpop.f32.mrf.mxu0
  %v1760 = vadd.f32 0.0, %v1759
  %v1761 = vpop.f32.mrf.mxu0
  %1762 = vmatprep.mubr.f32.mxu0 0.0
  %1763 = vmatmul.mubr.f32.gmra.mxu0 %v1691
  %v1764 = vpop.f32.mrf.mxu0
  %v1765 = vadd.f32 0.0, %v1764
  %v1766 = vpop.f32.mrf.mxu0
  %1767 = vdwg.mxu0
  %v1768 = vmul.f32 %v1760, 0.05303301
  %v1769 = vmul.f32 %v1765, 0.05303301
  %v1770 = vsel %vm1466, %v1768, -inf
  %1771 = vmax.xlane.f32.xlu0 %v1770
  %v1772 = vpop.xlane.xlu0 %1771
  %v1773 = vsel %vm1466, %v1769, -inf
  %1774 = vmax.xlane.f32.xlu0 %v1773
  %v1775 = vpop.xlane.xlu0 %1774
  %v1776 = vsub.f32 %v1768, %v1772
  %v1777 = vsub.f32 %v1769, %v1775
  %v1778 = vmul.f32 %v1776, 1.442695
  %v1779 = vpow.pop %v1778
  %v1780 = vmul.f32 %v1777, 1.442695
  %v1781 = vpow.pop %v1780
  %v1782 = vsel %vm1466, %v1779, 0.0
  %1783 = vadd.xlane.f32.xlu0 %v1782
  %v1784 = vpop.xlane.xlu0 %1783
  %v1785 = vsel %vm1466, %v1781, 0.0
  %1786 = vadd.xlane.f32.xlu0 %v1785
  %v1787 = vpop.xlane.xlu0 %1786
  %v1788 = vrcp.pop %v1784
  %v1789 = vmul.f32 %v1779, %v1788
  %v1790 = vrcp.pop %v1787
  %v1791 = vmul.f32 %v1781, %v1790
  %1796 = vrot.lane.b32.xlu0 %v1427, 64
  %v1797 = vpop.permute.xlu0 %1796
  %1798 = vrot.lane.b32.xlu0 %v1432, 64
  %v1799 = vpop.permute.xlu0 %1798
  %1800 = vrot.lane.b32.xlu0 %v1437, 64
  %v1801 = vpop.permute.xlu0 %1800
  %1802 = vrot.lane.b32.xlu0 %v1442, 64
  %v1803 = vpop.permute.xlu0 %1802
  %v1809 = vsel %vm1466, %v1789, 0
  %v1812 = vsel %vm1466, %v1791, 0
  %1814 = vmatprep.subr.mxu0 0.0
  %1815 = vmatpush1.msra.mxu0 0.0
  %1816 = vmatprep.subr.mxu0 0.0
  %1817 = vmatpush1.msra.mxu0 0.0
  %1818 = vmatprep.subr.mxu0 0.0
  %1819 = vmatpush1.msra.mxu0 0.0
  %1820 = vmatprep.subr.mxu0 0.0
  %1821 = vmatpush1.msra.mxu0 0.0
  %1822 = vmatprep.subr.mxu0 0.0
  %1823 = vmatpush1.msra.mxu0 0.0
  %1824 = vmatprep.subr.mxu0 0.0
  %1825 = vmatpush1.msra.mxu0 0.0
  %1826 = vmatprep.subr.mxu0 0.0
  %1827 = vmatpush1.msra.mxu0 0.0
  %1828 = vmatprep.subr.mxu0 0.0
  %1829 = vmatpush1.msra.mxu0 0.0
  %1830 = vmatprep.subr.mxu0 0.0
  %1831 = vmatpush1.msra.mxu0 0.0
  %1832 = vmatprep.subr.mxu0 0.0
  %1833 = vmatpush1.msra.mxu0 0.0
  %1834 = vmatprep.subr.mxu0 0.0
  %1835 = vmatpush1.msra.mxu0 0.0
  %1836 = vmatprep.subr.mxu0 0.0
  %1837 = vmatpush1.msra.mxu0 0.0
  %1838 = vmatprep.subr.mxu0 0.0
  %1839 = vmatpush1.msra.mxu0 %v1803
  %1840 = vmatprep.subr.mxu0 0.0
  %1841 = vmatpush1.msra.mxu0 %v1801
  %1842 = vmatprep.subr.mxu0 0.0
  %1843 = vmatpush1.msra.mxu0 %v1799
  %1844 = vmatprep.subr.mxu0 0.0
  %1845 = vmatpush1.msra.mxu0 %v1797
  %1846 = vmatprep.subr.mxu0 0.0
  %1847 = vmatpush2.msra.mxu0 0.0
  %1848 = vmatprep.subr.mxu0 0.0
  %1849 = vmatpush2.msra.mxu0 0.0
  %1850 = vmatprep.subr.mxu0 0.0
  %1851 = vmatpush2.msra.mxu0 0.0
  %1852 = vmatprep.subr.mxu0 0.0
  %1853 = vmatpush2.msra.mxu0 0.0
  %1854 = vmatprep.subr.mxu0 0.0
  %1855 = vmatpush2.msra.mxu0 0.0
  %1856 = vmatprep.subr.mxu0 0.0
  %1857 = vmatpush2.msra.mxu0 0.0
  %1858 = vmatprep.subr.mxu0 0.0
  %1859 = vmatpush2.msra.mxu0 0.0
  %1860 = vmatprep.subr.mxu0 0.0
  %1861 = vmatpush2.msra.mxu0 0.0
  %1862 = vmatprep.subr.mxu0 0.0
  %1863 = vmatpush2.msra.mxu0 0.0
  %1864 = vmatprep.subr.mxu0 0.0
  %1865 = vmatpush2.msra.mxu0 0.0
  %1866 = vmatprep.subr.mxu0 0.0
  %1867 = vmatpush2.msra.mxu0 0.0
  %1868 = vmatprep.subr.mxu0 0.0
  %1869 = vmatpush2.msra.mxu0 0.0
  %1870 = vmatprep.subr.mxu0 0.0
  %1871 = vmatpush2.msra.mxu0 0.0
  %1872 = vmatprep.subr.mxu0 0.0
  %1873 = vmatpush2.msra.mxu0 0.0
  %1874 = vmatprep.subr.mxu0 0.0
  %1875 = vmatpush2.msra.mxu0 0.0
  %1876 = vmatprep.subr.mxu0 0.0
  %1877 = vmatpush2.msra.mxu0 0.0
  %1878 = vmatprep.mubr.f32.mxu0 0.0
  %1879 = vmatmul.mubr.f32.gmra.mxu0 %v1809
  %v1880 = vpop.f32.mrf.mxu0
  %v1881 = vadd.f32 0.0, %v1880
  %v1882 = vpop.f32.mrf.mxu0
  %1883 = vmatprep.mubr.f32.mxu0 0.0
  %1884 = vmatmul.mubr.f32.gmra.mxu0 %v1812
  %v1885 = vpop.f32.mrf.mxu0
  %v1886 = vadd.f32 0.0, %v1885
  %v1887 = vpop.f32.mrf.mxu0
  %1888 = vdwg.mxu0
  %v1889 = vsel %vm1448, nan, %v1881
  %v1890 = vsel %vm1449, nan, %v1886
  %1891 = vst.msk [vmem:[%s4] sm:$0xff] %vm1466, %v1669
  %vm1892 = vcmask 260096
  %1893 = vst.msk [vmem:[%s4 + $0x8] sm:$0x7f] %vm1892, %v1670
  %1894 = vst.msk [vmem:[%s4 + $0x10] sm:$0xff] %vm1466, %v1889
  %1895 = vst.msk [vmem:[%s4 + $0x18] sm:$0x7f] %vm1892, %v1890
  // Predicated region
  $region18: #{tpu_custom_call.1} parent=0 // pred_check
    _
  $region19: #{tpu_custom_call.1} parent=0 // pred_check_branch
    %1897 = sbr.rel (0) target = $region21
  $region20: #{tpu_custom_call.1} parent=0 // pred_region
    _
  $region21: #{tpu_custom_call.1} parent=0 // pred_fallthru
    _
  // Predicated region
  $region22: #{tpu_custom_call.1} parent=0 // pred_check
    _
  $region23: #{tpu_custom_call.1} parent=0 // pred_check_branch
    %1899 = sbr.rel (0) target = $region25
  $region24: #{tpu_custom_call.1} parent=0 // pred_region
    _
  $region25: #{tpu_custom_call.1} parent=0 // pred_fallthru
    _

</llo_original>
